<compile_context>
chip_gen: v7x
topology: tpu7x:2x2x1
jax: 0.10.0
libtpu: 0.0.40
codegen_flags: <defaults>
</compile_context>

<pallas_src>
import jax
import jax.numpy as jnp
from jax.experimental import pallas as pl
from jax.experimental.pallas import tpu as pltpu

H1, H2, H3 = 512, 256, 64
H3_PAD = 128          # 64-wide hidden layer padded to full lane width
N_OUT = 5
N_PAD = 128           # output padded to full lane width (unmasked stores)
TB = 128              # batch tile (full MXU row tile on v5e; ~0.5 MiB/step VMEM)


def ddqn_kernel(x_ref,
                w1_ref, b1_ref,
                w2_ref, b2_ref,
                w3_ref, b3_ref,
                w4_ref, b4_ref,
                o_ref):
    # Weights/activations bf16 (MXU native), accumulation f32, epilogue f32.
    h = jnp.dot(x_ref[...], w1_ref[...], preferred_element_type=jnp.float32)
    h = jnp.maximum(h + b1_ref[...], 0.0).astype(jnp.bfloat16)

    h = jnp.dot(h, w2_ref[...], preferred_element_type=jnp.float32)
    h = jnp.maximum(h + b2_ref[...], 0.0).astype(jnp.bfloat16)

    h = jnp.dot(h, w3_ref[...], preferred_element_type=jnp.float32)
    h = jnp.maximum(h + b3_ref[...], 0.0).astype(jnp.bfloat16)

    o = jnp.dot(h, w4_ref[...], preferred_element_type=jnp.float32)
    o_ref[...] = o + b4_ref[...]


def _const_spec(arr):
    # Same block at every grid step -> DMA'd once, stays VMEM-resident.
    # (Helper function, not a loop-lambda: no late-binding trap.)
    return pl.BlockSpec(arr.shape, lambda i: (0, 0))


def ddqn_forward(x, params, *, tb=TB):
    """x: (B, state_dim); params from init_params()[0]. Returns (B, 5) f32."""
    B, S = x.shape
    bp = pl.cdiv(B, tb) * tb

    xb = x.astype(jnp.bfloat16)
    if bp != B:
        xb = jnp.pad(xb, ((0, bp - B), (0, 0)))

    args = (
        xb,
        params["w1"], params["b1"],
        params["w2"], params["b2"],
        params["w3"], params["b3"],
        params["w4"], params["b4"],
    )

    in_specs = [pl.BlockSpec((tb, S), lambda i: (i, 0))]   # x: tiled over batch
    in_specs += [_const_spec(a) for a in args[1:]]          # weights: resident
    out_spec = pl.BlockSpec((tb, N_PAD), lambda i: (i, 0))  # lane-dense output

    out = pl.pallas_call(
        ddqn_kernel,
        out_shape=jax.ShapeDtypeStruct((bp, N_PAD), jnp.float32),
        grid=(bp // tb,),
        in_specs=in_specs,
        out_specs=out_spec,
        compiler_params=pltpu.CompilerParams(
            dimension_semantics=("parallel",)),
    )(*args)

    return out[:B, :N_OUT]


def init_params(key, state_dim):
    """Matches the PyTorch module's init: weights ~ N(0, 0.1) (cast to bf16),
    biases ~ nn.Linear default U(-1/sqrt(fan_in), +1/sqrt(fan_in)) in f32.
    Returns (padded params for the kernel, raw unpadded params for reference).
    Weights are stored pre-transposed as (in, out)."""
    dims = [(state_dim, H1), (H1, H2), (H2, H3), (H3, N_OUT)]
    raw = {}
    keys = jax.random.split(key, 2 * len(dims))
    for i, (fan_in, fan_out) in enumerate(dims):
        wk, bk = keys[2 * i], keys[2 * i + 1]
        w = (0.1 * jax.random.normal(wk, (fan_in, fan_out), dtype=jnp.float32)
             ).astype(jnp.bfloat16)
        bound = 1.0 / jnp.sqrt(jnp.float32(fan_in))
        b = jax.random.uniform(bk, (1, fan_out), minval=-bound, maxval=bound,
                               dtype=jnp.float32)
        raw[f"w{i + 1}"] = w
        raw[f"b{i + 1}"] = b

    # Zero-pad the 64-wide hidden layer and the 5-wide output to 128 lanes.
    # Zero bias + zero weight columns -> ReLU(0) = 0 contributes nothing, so
    # the logical result is unchanged.
    padded = {
        "w1": raw["w1"], "b1": raw["b1"],
        "w2": raw["w2"], "b2": raw["b2"],
        "w3": jnp.pad(raw["w3"], ((0, 0), (0, H3_PAD - H3))),
        "b3": jnp.pad(raw["b3"], ((0, 0), (0, H3_PAD - H3))),
        "w4": jnp.pad(raw["w4"], ((0, H3_PAD - H3), (0, N_PAD - N_OUT))),
        "b4": jnp.pad(raw["b4"], ((0, 0), (0, N_PAD - N_OUT))),
    }
    return padded, raw


def reference_forward(x, raw):
    """Pure-JAX reference mirroring the kernel numerics (bf16 weights /
    activations, f32 accumulation) on the unpadded logical shapes."""
    h = jnp.dot(x.astype(jnp.bfloat16), raw["w1"],
                preferred_element_type=jnp.float32)
    h = jnp.maximum(h + raw["b1"], 0.0).astype(jnp.bfloat16)
    h = jnp.dot(h, raw["w2"], preferred_element_type=jnp.float32)
    h = jnp.maximum(h + raw["b2"], 0.0).astype(jnp.bfloat16)
    h = jnp.dot(h, raw["w3"], preferred_element_type=jnp.float32)
    h = jnp.maximum(h + raw["b3"], 0.0).astype(jnp.bfloat16)
    o = jnp.dot(h, raw["w4"], preferred_element_type=jnp.float32)
    return o + raw["b4"]


if __name__ == "__main__":
    key = jax.random.PRNGKey(0)
    pkey, xkey = jax.random.split(key)

    batch = 8
    state_dim = 16

    params, raw = init_params(pkey, state_dim)
    x = jax.random.normal(xkey, (batch, state_dim), dtype=jnp.float32)

    out = jax.block_until_ready(ddqn_forward(x, params))
    ref = reference_forward(x, raw)

    assert out.shape == (batch, N_OUT), out.shape
    assert jnp.allclose(out, ref, atol=1e-2, rtol=1e-2), "mismatch vs reference"

    print("KERNEL_OK")
</pallas_src>

<mosaic_0001>
module attributes {stable_mosaic.version = 11 : i64} {
  func.func @ddqn_kernel(%arg0: i32, %arg1: memref<128x16xbf16, #tpu.memory_space<vmem>>, %arg2: memref<16x512xbf16, #tpu.memory_space<vmem>>, %arg3: memref<1x512xf32, #tpu.memory_space<vmem>>, %arg4: memref<512x256xbf16, #tpu.memory_space<vmem>>, %arg5: memref<1x256xf32, #tpu.memory_space<vmem>>, %arg6: memref<256x128xbf16, #tpu.memory_space<vmem>>, %arg7: memref<1x128xf32, #tpu.memory_space<vmem>>, %arg8: memref<128x128xbf16, #tpu.memory_space<vmem>>, %arg9: memref<1x128xf32, #tpu.memory_space<vmem>>, %arg10: memref<128x128xf32, #tpu.memory_space<vmem>>) attributes {dimension_semantics = [#tpu.dimension_semantics<parallel>], iteration_bounds = array<i64: 1>, scalar_prefetch = 0 : i64, scratch_operands = 0 : i64, tpu.core_type = #tpu.core_type<tc>, window_params = [{transform_indices = @transform_0, window_bounds = array<i64: 128, 16>}, {pipeline_mode = #tpu.pipeline_mode<synchronous>, transform_indices = @transform_1, window_bounds = array<i64: 16, 512>}, {pipeline_mode = #tpu.pipeline_mode<synchronous>, transform_indices = @transform_2, window_bounds = array<i64: 1, 512>}, {pipeline_mode = #tpu.pipeline_mode<synchronous>, transform_indices = @transform_3, window_bounds = array<i64: 512, 256>}, {pipeline_mode = #tpu.pipeline_mode<synchronous>, transform_indices = @transform_4, window_bounds = array<i64: 1, 256>}, {pipeline_mode = #tpu.pipeline_mode<synchronous>, transform_indices = @transform_5, window_bounds = array<i64: 256, 128>}, {pipeline_mode = #tpu.pipeline_mode<synchronous>, transform_indices = @transform_6, window_bounds = array<i64: 1, 128>}, {pipeline_mode = #tpu.pipeline_mode<synchronous>, transform_indices = @transform_7, window_bounds = array<i64: 128, 128>}, {pipeline_mode = #tpu.pipeline_mode<synchronous>, transform_indices = @transform_8, window_bounds = array<i64: 1, 128>}, {transform_indices = @transform_9, window_bounds = array<i64: 128, 128>}]} {
    %c0 = arith.constant 0 : index
    %c0_0 = arith.constant 0 : index
    %0 = vector.load %arg1[%c0, %c0_0] : memref<128x16xbf16, #tpu.memory_space<vmem>>, vector<128x16xbf16>
    %c0_1 = arith.constant 0 : index
    %c0_2 = arith.constant 0 : index
    %1 = vector.load %arg2[%c0_1, %c0_2] : memref<16x512xbf16, #tpu.memory_space<vmem>>, vector<16x512xbf16>
    %cst = arith.constant dense<0.000000e+00> : vector<128x512xf32>
    %2 = tpu.matmul %0, %1, %cst {dimension_numbers = #tpu.dot_dimension_numbers<[1], [0], [0], [1], [0, 0, 1, 1], [], []>} : vector<128x16xbf16>, vector<16x512xbf16>, vector<128x512xf32> -> vector<128x512xf32>
    %c0_3 = arith.constant 0 : index
    %c0_4 = arith.constant 0 : index
    %3 = vector.load %arg3[%c0_3, %c0_4] : memref<1x512xf32, #tpu.memory_space<vmem>>, vector<1x512xf32>
    %4 = vector.broadcast %3 : vector<1x512xf32> to vector<128x512xf32>
    %5 = arith.addf %2, %4 : vector<128x512xf32>
    %cst_5 = arith.constant 0.000000e+00 : f32
    %6 = vector.broadcast %cst_5 : f32 to vector<128x512xf32>
    %7 = arith.maximumf %5, %6 : vector<128x512xf32>
    %8 = arith.truncf %7 : vector<128x512xf32> to vector<128x512xbf16>
    %c0_6 = arith.constant 0 : index
    %c0_7 = arith.constant 0 : index
    %9 = vector.load %arg4[%c0_6, %c0_7] : memref<512x256xbf16, #tpu.memory_space<vmem>>, vector<512x256xbf16>
    %cst_8 = arith.constant dense<0.000000e+00> : vector<128x256xf32>
    %10 = tpu.matmul %8, %9, %cst_8 {dimension_numbers = #tpu.dot_dimension_numbers<[1], [0], [0], [1], [0, 0, 1, 1], [], []>} : vector<128x512xbf16>, vector<512x256xbf16>, vector<128x256xf32> -> vector<128x256xf32>
    %c0_9 = arith.constant 0 : index
    %c0_10 = arith.constant 0 : index
    %11 = vector.load %arg5[%c0_9, %c0_10] : memref<1x256xf32, #tpu.memory_space<vmem>>, vector<1x256xf32>
    %12 = vector.broadcast %11 : vector<1x256xf32> to vector<128x256xf32>
    %13 = arith.addf %10, %12 : vector<128x256xf32>
    %cst_11 = arith.constant 0.000000e+00 : f32
    %14 = vector.broadcast %cst_11 : f32 to vector<128x256xf32>
    %15 = arith.maximumf %13, %14 : vector<128x256xf32>
    %16 = arith.truncf %15 : vector<128x256xf32> to vector<128x256xbf16>
    %c0_12 = arith.constant 0 : index
    %c0_13 = arith.constant 0 : index
    %17 = vector.load %arg6[%c0_12, %c0_13] : memref<256x128xbf16, #tpu.memory_space<vmem>>, vector<256x128xbf16>
    %cst_14 = arith.constant dense<0.000000e+00> : vector<128x128xf32>
    %18 = tpu.matmul %16, %17, %cst_14 {dimension_numbers = #tpu.dot_dimension_numbers<[1], [0], [0], [1], [0, 0, 1, 1], [], []>} : vector<128x256xbf16>, vector<256x128xbf16>, vector<128x128xf32> -> vector<128x128xf32>
    %c0_15 = arith.constant 0 : index
    %c0_16 = arith.constant 0 : index
    %19 = vector.load %arg7[%c0_15, %c0_16] : memref<1x128xf32, #tpu.memory_space<vmem>>, vector<1x128xf32>
    %20 = vector.broadcast %19 : vector<1x128xf32> to vector<128x128xf32>
    %21 = arith.addf %18, %20 : vector<128x128xf32>
    %cst_17 = arith.constant 0.000000e+00 : f32
    %22 = vector.broadcast %cst_17 : f32 to vector<128x128xf32>
    %23 = arith.maximumf %21, %22 : vector<128x128xf32>
    %24 = arith.truncf %23 : vector<128x128xf32> to vector<128x128xbf16>
    %c0_18 = arith.constant 0 : index
    %c0_19 = arith.constant 0 : index
    %25 = vector.load %arg8[%c0_18, %c0_19] : memref<128x128xbf16, #tpu.memory_space<vmem>>, vector<128x128xbf16>
    %cst_20 = arith.constant dense<0.000000e+00> : vector<128x128xf32>
    %26 = tpu.matmul %24, %25, %cst_20 {dimension_numbers = #tpu.dot_dimension_numbers<[1], [0], [0], [1], [0, 0, 1, 1], [], []>} : vector<128x128xbf16>, vector<128x128xbf16>, vector<128x128xf32> -> vector<128x128xf32>
    %c0_21 = arith.constant 0 : index
    %c0_22 = arith.constant 0 : index
    %27 = vector.load %arg9[%c0_21, %c0_22] : memref<1x128xf32, #tpu.memory_space<vmem>>, vector<1x128xf32>
    %28 = vector.broadcast %27 : vector<1x128xf32> to vector<128x128xf32>
    %29 = arith.addf %26, %28 : vector<128x128xf32>
    %c0_23 = arith.constant 0 : index
    %c0_24 = arith.constant 0 : index
    %30 = vector.load %arg10[%c0_23, %c0_24] : memref<128x128xf32, #tpu.memory_space<vmem>>, vector<128x128xf32>
    tpu.vector_store %arg10[%c0_23, %c0_24], %29 {strides = array<i32>} : memref<128x128xf32, #tpu.memory_space<vmem>>, vector<128x128xf32>,
    return
  }
  func.func @transform_0(%arg0: i32) -> (i32, i32) {
    %c0_i32 = arith.constant 0 : i32
    %c0_i32_0 = arith.constant 0 : i32
    return %arg0, %c0_i32 : i32, i32
  }
  func.func @transform_1(%arg0: i32) -> (i32, i32) {
    %c0_i32 = arith.constant 0 : i32
    %c0_i32_0 = arith.constant 0 : i32
    %c0_i32_1 = arith.constant 0 : i32
    return %c0_i32, %c0_i32_0 : i32, i32
  }
  func.func @transform_2(%arg0: i32) -> (i32, i32) {
    %c0_i32 = arith.constant 0 : i32
    %c0_i32_0 = arith.constant 0 : i32
    %c0_i32_1 = arith.constant 0 : i32
    return %c0_i32, %c0_i32_0 : i32, i32
  }
  func.func @transform_3(%arg0: i32) -> (i32, i32) {
    %c0_i32 = arith.constant 0 : i32
    %c0_i32_0 = arith.constant 0 : i32
    %c0_i32_1 = arith.constant 0 : i32
    return %c0_i32, %c0_i32_0 : i32, i32
  }
  func.func @transform_4(%arg0: i32) -> (i32, i32) {
    %c0_i32 = arith.constant 0 : i32
    %c0_i32_0 = arith.constant 0 : i32
    %c0_i32_1 = arith.constant 0 : i32
    return %c0_i32, %c0_i32_0 : i32, i32
  }
  func.func @transform_5(%arg0: i32) -> (i32, i32) {
    %c0_i32 = arith.constant 0 : i32
    %c0_i32_0 = arith.constant 0 : i32
    %c0_i32_1 = arith.constant 0 : i32
    return %c0_i32, %c0_i32_0 : i32, i32
  }
  func.func @transform_6(%arg0: i32) -> (i32, i32) {
    %c0_i32 = arith.constant 0 : i32
    %c0_i32_0 = arith.constant 0 : i32
    %c0_i32_1 = arith.constant 0 : i32
    return %c0_i32, %c0_i32_0 : i32, i32
  }
  func.func @transform_7(%arg0: i32) -> (i32, i32) {
    %c0_i32 = arith.constant 0 : i32
    %c0_i32_0 = arith.constant 0 : i32
    %c0_i32_1 = arith.constant 0 : i32
    return %c0_i32, %c0_i32_0 : i32, i32
  }
  func.func @transform_8(%arg0: i32) -> (i32, i32) {
    %c0_i32 = arith.constant 0 : i32
    %c0_i32_0 = arith.constant 0 : i32
    %c0_i32_1 = arith.constant 0 : i32
    return %c0_i32, %c0_i32_0 : i32, i32
  }
  func.func @transform_9(%arg0: i32) -> (i32, i32) {
    %c0_i32 = arith.constant 0 : i32
    %c0_i32_0 = arith.constant 0 : i32
    return %arg0, %c0_i32 : i32, i32
  }
}

</mosaic_0001>

<llo_original>
// kernel: tpu_custom_call.1
$region0: #{tpu_custom_call.1}
  #allocation0 [shape = 'u32[]', space=smem, size = 0x4, offset = 0x4, fixed_abs, tag = 'smem constant byte address 0x4 - core index']
  #allocation1 [shape = 'u32[144,128]{1,0:T(1,128)}', space=vmem, size = 0x12000, scoped, tag = 'internal scratch']
  %s0 = inlined_call_operand.vmem [shape: bf16[128,16], index: 0, kind: input, shape index: {}]
  %s1 = inlined_call_operand.vmem [shape: bf16[16,512], index: 1, kind: input, shape index: {}]
  %s2 = inlined_call_operand.hbm [shape: f32[1,512], index: 2, kind: input, shape index: {}]
  %s3 = inlined_call_operand.hbm [shape: bf16[512,256], index: 3, kind: input, shape index: {}]
  %s4 = inlined_call_operand.vmem [shape: f32[1,256], index: 4, kind: input, shape index: {}]
  %s5 = inlined_call_operand.hbm [shape: bf16[256,128], index: 5, kind: input, shape index: {}]
  %s6 = inlined_call_operand.hbm [shape: f32[1,128], index: 6, kind: input, shape index: {}]
  %s7 = inlined_call_operand.vmem [shape: bf16[128,128], index: 7, kind: input, shape index: {}]
  %s8 = inlined_call_operand.vmem [shape: f32[1,128], index: 8, kind: input, shape index: {}]
  %s9 = inlined_call_operand.hbm [shape: f32[128,128], index: 9, kind: output, shape index: {}]
  %s10 = sld [smem:[#allocation0]]
  $region62: #{tpu_custom_call.1} parent=0
    _
  %s12 = ssub.s32 1, %s10
  %s13 = scalar_select 0, %s12, %s10
  $region1: #{tpu_custom_call.1} parent=0
    #allocation2 [shape = 'u8[2048]{0}', space=vmem, size = 0x800, scoped, tag = 'input window, operand 2, single buffered']
    #allocation3 [shape = 's32[1]{0}', space=sflag, size = 0x4, scoped, tag = 'scoped memory for tpu_custom_call.1']
    #allocation4 [shape = 's32[1]{0}', space=sflag, size = 0x4, scoped, tag = 'scoped memory for tpu_custom_call.1']
    #allocation5 [shape = 'u8[262144]{0}', space=vmem, size = 0x40000, scoped, tag = 'input window, operand 3, single buffered']
    #allocation6 [shape = 's32[1]{0}', space=sflag, size = 0x4, scoped, tag = 'scoped memory for tpu_custom_call.1']
    #allocation7 [shape = 'u8[65536]{0}', space=vmem, size = 0x10000, scoped, tag = 'input window, operand 5, single buffered']
    #allocation8 [shape = 'u8[512]{0}', space=vmem, size = 0x400, scoped, tag = 'input window, operand 6, single buffered']
    #allocation9 [shape = 's32[1]{0}', space=sflag, size = 0x4, scoped, tag = 'scoped memory for tpu_custom_call.1']
    #allocation10 [shape = 'u8[65536]{0}', space=vmem, size = 0x10000, scoped, tag = 'output window, operand 0, single buffered']
    %14 = vsyncpa [#allocation3], 0
    %15 = vsyncpa [#allocation6], 0
    %16 = vsyncpa [#allocation9], 0
    %17 = vsyncpa [#allocation4], 0
    // Predicated region
    $region2: #{tpu_custom_call.1} parent=1 // pred_check
      _
    $region3: #{tpu_custom_call.1} parent=1 // pred_check_branch
      %19 = sbr.rel (0) target = $region5
    $region4: #{tpu_custom_call.1} parent=1 // pred_region
      _
    $region5: #{tpu_custom_call.1} parent=1 // pred_fallthru
      _
    // Predicated region
    $region6: #{tpu_custom_call.1} parent=1 // pred_check
      _
    $region7: #{tpu_custom_call.1} parent=1 // pred_check_branch
      %21 = sbr.rel (0) target = $region9
    $region8: #{tpu_custom_call.1} parent=1 // pred_region
      _
    $region9: #{tpu_custom_call.1} parent=1 // pred_fallthru
      _
    // Predicated region
    $region10: #{tpu_custom_call.1} parent=1 // pred_check
      _
    $region11: #{tpu_custom_call.1} parent=1 // pred_check_branch
      %23 = sbr.rel (0) target = $region13
    $region12: #{tpu_custom_call.1} parent=1 // pred_region
      %s25 = ssub.s32 64, 64
      %26 = vsyncadd [#allocation3], %s25
      %s28 = sshll.u32 [#allocation2], 4
      %s29 = int_to_ptr.vmem [resolvable:$true] %s28
      %31 = dma.hbm_to_vmem [thread:$0]  %s2, 64, %s29, [#allocation3]
    $region13: #{tpu_custom_call.1} parent=1 // pred_fallthru
      _
    // Predicated region
    $region14: #{tpu_custom_call.1} parent=1 // pred_check
      _
    $region15: #{tpu_custom_call.1} parent=1 // pred_check_branch
      %33 = sbr.rel (0) target = $region17
    $region16: #{tpu_custom_call.1} parent=1 // pred_region
      %s35 = ssub.s32 8192, 8192
      %36 = vsyncadd [#allocation6], %s35
      %s37 = sshll.u32 [#allocation5], 4
      %s38 = int_to_ptr.vmem [resolvable:$true] %s37
      %43 = dma.hbm_to_vmem [thread:$0]  %s3, 8192, %s38, [#allocation6], 128, 128, 8
    $region17: #{tpu_custom_call.1} parent=1 // pred_fallthru
      _
    // Predicated region
    $region18: #{tpu_custom_call.1} parent=1 // pred_check
      _
    $region19: #{tpu_custom_call.1} parent=1 // pred_check_branch
      %45 = sbr.rel (0) target = $region21
    $region20: #{tpu_custom_call.1} parent=1 // pred_region
      _
    $region21: #{tpu_custom_call.1} parent=1 // pred_fallthru
      _
    // Predicated region
    $region22: #{tpu_custom_call.1} parent=1 // pred_check
      _
    $region23: #{tpu_custom_call.1} parent=1 // pred_check_branch
      %47 = sbr.rel (0) target = $region25
    $region24: #{tpu_custom_call.1} parent=1 // pred_region
      %s49 = ssub.s32 2048, 2048
      %50 = vsyncadd [#allocation6], %s49
      %s51 = sshll.u32 [#allocation7], 4
      %s52 = int_to_ptr.vmem [resolvable:$true] %s51
      %57 = dma.hbm_to_vmem [thread:$0]  %s5, 2048, %s52, [#allocation6], 64, 64, 4
    $region25: #{tpu_custom_call.1} parent=1 // pred_fallthru
      _
    // Predicated region
    $region26: #{tpu_custom_call.1} parent=1 // pred_check
      _
    $region27: #{tpu_custom_call.1} parent=1 // pred_check_branch
      %59 = sbr.rel (0) target = $region29
    $region28: #{tpu_custom_call.1} parent=1 // pred_region
      %s61 = ssub.s32 16, 16
      %62 = vsyncadd [#allocation9], %s61
      %s64 = sshll.u32 [#allocation8], 4
      %s65 = int_to_ptr.vmem [resolvable:$true] %s64
      %67 = dma.hbm_to_vmem [thread:$0]  %s6, 16, %s65, [#allocation9]
    $region29: #{tpu_custom_call.1} parent=1 // pred_fallthru
      _
    // Predicated region
    $region30: #{tpu_custom_call.1} parent=1 // pred_check
      _
    $region31: #{tpu_custom_call.1} parent=1 // pred_check_branch
      %69 = sbr.rel (0) target = $region33
    $region32: #{tpu_custom_call.1} parent=1 // pred_region
      _
    $region33: #{tpu_custom_call.1} parent=1 // pred_fallthru
      _
    // Predicated region
    $region34: #{tpu_custom_call.1} parent=1 // pred_check
      _
    $region35: #{tpu_custom_call.1} parent=1 // pred_check_branch
      %71 = sbr.rel (0) target = $region37
    $region36: #{tpu_custom_call.1} parent=1 // pred_region
      _
    $region37: #{tpu_custom_call.1} parent=1 // pred_fallthru
      _
    // Predicated region
    $region38: #{tpu_custom_call.1} parent=1 // pred_check
      _
    $region39: #{tpu_custom_call.1} parent=1 // pred_check_branch
      %73 = sbr.rel (0) target = $region41
    $region40: #{tpu_custom_call.1} parent=1 // pred_region
      %74 = dma.done [#allocation3], 64
    $region41: #{tpu_custom_call.1} parent=1 // pred_fallthru
      _
    // Predicated region
    $region42: #{tpu_custom_call.1} parent=1 // pred_check
      _
    $region43: #{tpu_custom_call.1} parent=1 // pred_check_branch
      %76 = sbr.rel (0) target = $region45
    $region44: #{tpu_custom_call.1} parent=1 // pred_region
      %77 = dma.done [#allocation6], 8192
    $region45: #{tpu_custom_call.1} parent=1 // pred_fallthru
      _
    // Predicated region
    $region46: #{tpu_custom_call.1} parent=1 // pred_check
      _
    $region47: #{tpu_custom_call.1} parent=1 // pred_check_branch
      %79 = sbr.rel (0) target = $region49
    $region48: #{tpu_custom_call.1} parent=1 // pred_region
      %80 = dma.done [#allocation6], 2048
    $region49: #{tpu_custom_call.1} parent=1 // pred_fallthru
      _
    // Predicated region
    $region50: #{tpu_custom_call.1} parent=1 // pred_check
      _
    $region51: #{tpu_custom_call.1} parent=1 // pred_check_branch
      %82 = sbr.rel (0) target = $region53
    $region52: #{tpu_custom_call.1} parent=1 // pred_region
      %83 = dma.done [#allocation9], 16
    $region53: #{tpu_custom_call.1} parent=1 // pred_fallthru
      _
    %v85 = vld [vmem:[%s0] sm:$0xf]
    %v86 = vld [vmem:[%s0 + $0x4] sm:$0xf]
    %v87 = vld [vmem:[%s0 + $0x8] sm:$0xf]
    %v88 = vld [vmem:[%s0 + $0xc] sm:$0xf]
    %v89 = vld [vmem:[%s0 + $0x10] sm:$0xf]
    %v90 = vld [vmem:[%s0 + $0x14] sm:$0xf]
    %v91 = vld [vmem:[%s0 + $0x18] sm:$0xf]
    %v92 = vld [vmem:[%s0 + $0x1c] sm:$0xf]
    %v93 = vld [vmem:[%s0 + $0x20] sm:$0xf]
    %v94 = vld [vmem:[%s0 + $0x24] sm:$0xf]
    %v95 = vld [vmem:[%s0 + $0x28] sm:$0xf]
    %v96 = vld [vmem:[%s0 + $0x2c] sm:$0xf]
    %v97 = vld [vmem:[%s0 + $0x30] sm:$0xf]
    %v98 = vld [vmem:[%s0 + $0x34] sm:$0xf]
    %v99 = vld [vmem:[%s0 + $0x38] sm:$0xf]
    %v100 = vld [vmem:[%s0 + $0x3c] sm:$0xf]
    %v101 = vld [vmem:[%s1] sm:$0xff]
    %v102 = vld [vmem:[%s1 + $0x8] sm:$0xff]
    %v103 = vld [vmem:[%s1 + $0x10] sm:$0xff]
    %v104 = vld [vmem:[%s1 + $0x18] sm:$0xff]
    %v105 = vld [vmem:[#allocation2] sm:$0xf]
    %v107 = vlaneseq
    %v108 = vshrl.u32 %v107, 7
    %v109 = vsub.s32 0, %v108
    %v110 = vrot.slane %v105, %v109
    %v111 = vlaneseq
    %v112 = vshrl.u32 %v111, 7
    %v113 = vsub.s32 1, %v112
    %v114 = vrot.slane %v105, %v113
    %v115 = vlaneseq
    %v116 = vshrl.u32 %v115, 7
    %v117 = vsub.s32 2, %v116
    %v118 = vrot.slane %v105, %v117
    %v119 = vlaneseq
    %v120 = vshrl.u32 %v119, 7
    %v121 = vsub.s32 3, %v120
    %v122 = vrot.slane %v105, %v121
    %v143 = vunpack.c.l.b16 %v85
    %v144 = vunpack.c.l.b16 %v86
    %v145 = vunpack.c.l.b16 %v87
    %v146 = vunpack.c.l.b16 %v88
    %v147 = vunpack.c.l.b16 %v89
    %v148 = vunpack.c.l.b16 %v90
    %v149 = vunpack.c.l.b16 %v91
    %v150 = vunpack.c.l.b16 %v92
    %v151 = vunpack.c.l.b16 %v93
    %v152 = vunpack.c.l.b16 %v94
    %v153 = vunpack.c.l.b16 %v95
    %v154 = vunpack.c.l.b16 %v96
    %v155 = vunpack.c.l.b16 %v97
    %v156 = vunpack.c.l.b16 %v98
    %v157 = vunpack.c.l.b16 %v99
    %v158 = vunpack.c.l.b16 %v100
    %v159 = vpack.c.b16 %v144, %v143
    %v160 = vpack.c.b16 %v146, %v145
    %v161 = vpack.c.b16 %v148, %v147
    %v162 = vpack.c.b16 %v150, %v149
    %v163 = vpack.c.b16 %v152, %v151
    %v164 = vpack.c.b16 %v154, %v153
    %v165 = vpack.c.b16 %v156, %v155
    %v166 = vpack.c.b16 %v158, %v157
    %v171 = vunpack.c.l.b16 %v101
    %v172 = vunpack.c.h.b16 %v101
    %v173 = vunpack.c.l.b16 %v102
    %v174 = vunpack.c.h.b16 %v102
    %v175 = vunpack.c.l.b16 %v103
    %v176 = vunpack.c.h.b16 %v103
    %v177 = vunpack.c.l.b16 %v104
    %v178 = vunpack.c.h.b16 %v104
    %v179 = vpack.c.b16 %v175, %v171
    %v180 = vpack.c.b16 %v176, %v172
    %v181 = vpack.c.b16 %v177, %v173
    %v182 = vpack.c.b16 %v178, %v174
    %vm187 = vcmask 130048
    %v189 = vsel %vm187, %v159, 0
    %v192 = vsel %vm187, %v160, 0
    %v195 = vsel %vm187, %v161, 0
    %v198 = vsel %vm187, %v162, 0
    %v201 = vsel %vm187, %v163, 0
    %v204 = vsel %vm187, %v164, 0
    %v207 = vsel %vm187, %v165, 0
    %v210 = vsel %vm187, %v166, 0
    %212 = vmatprep.subr.bf16.mxu0 %v180
    %213 = vmatpush1.bf16.msra.mxu0 %v179
    %214 = vmatprep.subr.bf16.mxu0 0
    %215 = vmatpush1.bf16.msra.mxu0 0
    %216 = vmatprep.subr.bf16.mxu0 0
    %217 = vmatpush1.bf16.msra.mxu0 0
    %218 = vmatprep.subr.bf16.mxu0 0
    %219 = vmatpush1.bf16.msra.mxu0 0
    %220 = vmatprep.subr.bf16.mxu0 0
    %221 = vmatpush1.bf16.msra.mxu0 0
    %222 = vmatprep.subr.bf16.mxu0 0
    %223 = vmatpush1.bf16.msra.mxu0 0
    %224 = vmatprep.subr.bf16.mxu0 0
    %225 = vmatpush1.bf16.msra.mxu0 0
    %226 = vmatprep.subr.bf16.mxu0 0
    %227 = vmatpush1.bf16.msra.mxu0 0
    %228 = vmatprep.subr.bf16.mxu0 0
    %229 = vmatpush1.bf16.msra.mxu0 0
    %230 = vmatprep.subr.bf16.mxu0 0
    %231 = vmatpush1.bf16.msra.mxu0 0
    %232 = vmatprep.subr.bf16.mxu0 0
    %233 = vmatpush1.bf16.msra.mxu0 0
    %234 = vmatprep.subr.bf16.mxu0 0
    %235 = vmatpush1.bf16.msra.mxu0 0
    %236 = vmatprep.subr.bf16.mxu0 0
    %237 = vmatpush1.bf16.msra.mxu0 0
    %238 = vmatprep.subr.bf16.mxu0 0
    %239 = vmatpush1.bf16.msra.mxu0 0
    %240 = vmatprep.subr.bf16.mxu0 0
    %241 = vmatpush1.bf16.msra.mxu0 0
    %242 = vmatprep.subr.bf16.mxu0 0
    %243 = vmatpush1.bf16.msra.mxu0 0
    %244 = vmatprep.mubr.bf16.mxu0 0
    %245 = vmatmul.mubr.bf16.gmra.mrb[0].mxu0 %v189
    %v246 = vpop.f32.mrb[0].mxu0
    %v247 = vadd.f32 %v110, %v246
    %v248 = vpop.f32.mrb[0].mxu0
    %v249 = vadd.f32 %v114, %v248
    %v250 = vpop.f32.mrb[0].mxu0
    %v251 = vadd.f32 %v110, %v250
    %v252 = vpop.f32.mrb[0].mxu0
    %v253 = vadd.f32 %v114, %v252
    %254 = vmatprep.mubr.bf16.mxu0 0
    %255 = vmatmul.mubr.bf16.gmra.mrb[0].mxu0 %v192
    %v256 = vpop.f32.mrb[0].mxu0
    %v257 = vadd.f32 %v110, %v256
    %v258 = vpop.f32.mrb[0].mxu0
    %v259 = vadd.f32 %v114, %v258
    %v260 = vpop.f32.mrb[0].mxu0
    %v261 = vadd.f32 %v110, %v260
    %v262 = vpop.f32.mrb[0].mxu0
    %v263 = vadd.f32 %v114, %v262
    %264 = vmatprep.mubr.bf16.mxu0 0
    %265 = vmatmul.mubr.bf16.gmra.mrb[0].mxu0 %v195
    %v266 = vpop.f32.mrb[0].mxu0
    %v267 = vadd.f32 %v110, %v266
    %v268 = vpop.f32.mrb[0].mxu0
    %v269 = vadd.f32 %v114, %v268
    %v270 = vpop.f32.mrb[0].mxu0
    %v271 = vadd.f32 %v110, %v270
    %v272 = vpop.f32.mrb[0].mxu0
    %v273 = vadd.f32 %v114, %v272
    %274 = vmatprep.mubr.bf16.mxu0 0
    %275 = vmatmul.mubr.bf16.gmra.mrb[0].mxu0 %v198
    %v276 = vpop.f32.mrb[0].mxu0
    %v277 = vadd.f32 %v110, %v276
    %v278 = vpop.f32.mrb[0].mxu0
    %v279 = vadd.f32 %v114, %v278
    %v280 = vpop.f32.mrb[0].mxu0
    %v281 = vadd.f32 %v110, %v280
    %v282 = vpop.f32.mrb[0].mxu0
    %v283 = vadd.f32 %v114, %v282
    %284 = vmatprep.mubr.bf16.mxu0 0
    %285 = vmatmul.mubr.bf16.gmra.mrb[0].mxu0 %v201
    %v286 = vpop.f32.mrb[0].mxu0
    %v287 = vadd.f32 %v110, %v286
    %v288 = vpop.f32.mrb[0].mxu0
    %v289 = vadd.f32 %v114, %v288
    %v290 = vpop.f32.mrb[0].mxu0
    %v291 = vadd.f32 %v110, %v290
    %v292 = vpop.f32.mrb[0].mxu0
    %v293 = vadd.f32 %v114, %v292
    %294 = vmatprep.mubr.bf16.mxu0 0
    %295 = vmatmul.mubr.bf16.gmra.mrb[0].mxu0 %v204
    %v296 = vpop.f32.mrb[0].mxu0
    %v297 = vadd.f32 %v110, %v296
    %v298 = vpop.f32.mrb[0].mxu0
    %v299 = vadd.f32 %v114, %v298
    %v300 = vpop.f32.mrb[0].mxu0
    %v301 = vadd.f32 %v110, %v300
    %v302 = vpop.f32.mrb[0].mxu0
    %v303 = vadd.f32 %v114, %v302
    %304 = vmatprep.mubr.bf16.mxu0 0
    %305 = vmatmul.mubr.bf16.gmra.mrb[0].mxu0 %v207
    %v306 = vpop.f32.mrb[0].mxu0
    %v307 = vadd.f32 %v110, %v306
    %v308 = vpop.f32.mrb[0].mxu0
    %v309 = vadd.f32 %v114, %v308
    %v310 = vpop.f32.mrb[0].mxu0
    %v311 = vadd.f32 %v110, %v310
    %v312 = vpop.f32.mrb[0].mxu0
    %v313 = vadd.f32 %v114, %v312
    %314 = vmatprep.mubr.bf16.mxu0 0
    %315 = vmatmul.mubr.bf16.gmra.mrb[0].mxu0 %v210
    %v316 = vpop.f32.mrb[0].mxu0
    %v317 = vadd.f32 %v110, %v316
    %v318 = vpop.f32.mrb[0].mxu0
    %v319 = vadd.f32 %v114, %v318
    %v320 = vpop.f32.mrb[0].mxu0
    %v321 = vadd.f32 %v110, %v320
    %v322 = vpop.f32.mrb[0].mxu0
    %v323 = vadd.f32 %v114, %v322
    %324 = vdwg.mxu0
    %325 = vmatprep.subr.bf16.mxu0 %v182
    %326 = vmatpush1.bf16.msra.mxu0 %v181
    %327 = vmatprep.subr.bf16.mxu0 0
    %328 = vmatpush1.bf16.msra.mxu0 0
    %329 = vmatprep.subr.bf16.mxu0 0
    %330 = vmatpush1.bf16.msra.mxu0 0
    %331 = vmatprep.subr.bf16.mxu0 0
    %332 = vmatpush1.bf16.msra.mxu0 0
    %333 = vmatprep.subr.bf16.mxu0 0
    %334 = vmatpush1.bf16.msra.mxu0 0
    %335 = vmatprep.subr.bf16.mxu0 0
    %336 = vmatpush1.bf16.msra.mxu0 0
    %337 = vmatprep.subr.bf16.mxu0 0
    %338 = vmatpush1.bf16.msra.mxu0 0
    %339 = vmatprep.subr.bf16.mxu0 0
    %340 = vmatpush1.bf16.msra.mxu0 0
    %341 = vmatprep.subr.bf16.mxu0 0
    %342 = vmatpush1.bf16.msra.mxu0 0
    %343 = vmatprep.subr.bf16.mxu0 0
    %344 = vmatpush1.bf16.msra.mxu0 0
    %345 = vmatprep.subr.bf16.mxu0 0
    %346 = vmatpush1.bf16.msra.mxu0 0
    %347 = vmatprep.subr.bf16.mxu0 0
    %348 = vmatpush1.bf16.msra.mxu0 0
    %349 = vmatprep.subr.bf16.mxu0 0
    %350 = vmatpush1.bf16.msra.mxu0 0
    %351 = vmatprep.subr.bf16.mxu0 0
    %352 = vmatpush1.bf16.msra.mxu0 0
    %353 = vmatprep.subr.bf16.mxu0 0
    %354 = vmatpush1.bf16.msra.mxu0 0
    %355 = vmatprep.subr.bf16.mxu0 0
    %356 = vmatpush1.bf16.msra.mxu0 0
    %357 = vmatprep.mubr.bf16.mxu0 0
    %358 = vmatmul.mubr.bf16.gmra.mrb[0].mxu0 %v189
    %v359 = vpop.f32.mrb[0].mxu0
    %v360 = vadd.f32 %v118, %v359
    %v361 = vpop.f32.mrb[0].mxu0
    %v362 = vadd.f32 %v122, %v361
    %v363 = vpop.f32.mrb[0].mxu0
    %v364 = vadd.f32 %v118, %v363
    %v365 = vpop.f32.mrb[0].mxu0
    %v366 = vadd.f32 %v122, %v365
    %367 = vmatprep.mubr.bf16.mxu0 0
    %368 = vmatmul.mubr.bf16.gmra.mrb[0].mxu0 %v192
    %v369 = vpop.f32.mrb[0].mxu0
    %v370 = vadd.f32 %v118, %v369
    %v371 = vpop.f32.mrb[0].mxu0
    %v372 = vadd.f32 %v122, %v371
    %v373 = vpop.f32.mrb[0].mxu0
    %v374 = vadd.f32 %v118, %v373
    %v375 = vpop.f32.mrb[0].mxu0
    %v376 = vadd.f32 %v122, %v375
    %377 = vmatprep.mubr.bf16.mxu0 0
    %378 = vmatmul.mubr.bf16.gmra.mrb[0].mxu0 %v195
    %v379 = vpop.f32.mrb[0].mxu0
    %v380 = vadd.f32 %v118, %v379
    %v381 = vpop.f32.mrb[0].mxu0
    %v382 = vadd.f32 %v122, %v381
    %v383 = vpop.f32.mrb[0].mxu0
    %v384 = vadd.f32 %v118, %v383
    %v385 = vpop.f32.mrb[0].mxu0
    %v386 = vadd.f32 %v122, %v385
    %387 = vmatprep.mubr.bf16.mxu0 0
    %388 = vmatmul.mubr.bf16.gmra.mrb[0].mxu0 %v198
    %v389 = vpop.f32.mrb[0].mxu0
    %v390 = vadd.f32 %v118, %v389
    %v391 = vpop.f32.mrb[0].mxu0
    %v392 = vadd.f32 %v122, %v391
    %v393 = vpop.f32.mrb[0].mxu0
    %v394 = vadd.f32 %v118, %v393
    %v395 = vpop.f32.mrb[0].mxu0
    %v396 = vadd.f32 %v122, %v395
    %397 = vmatprep.mubr.bf16.mxu0 0
    %398 = vmatmul.mubr.bf16.gmra.mrb[0].mxu0 %v201
    %v399 = vpop.f32.mrb[0].mxu0
    %v400 = vadd.f32 %v118, %v399
    %v401 = vpop.f32.mrb[0].mxu0
    %v402 = vadd.f32 %v122, %v401
    %v403 = vpop.f32.mrb[0].mxu0
    %v404 = vadd.f32 %v118, %v403
    %v405 = vpop.f32.mrb[0].mxu0
    %v406 = vadd.f32 %v122, %v405
    %407 = vmatprep.mubr.bf16.mxu0 0
    %408 = vmatmul.mubr.bf16.gmra.mrb[0].mxu0 %v204
    %v409 = vpop.f32.mrb[0].mxu0
    %v410 = vadd.f32 %v118, %v409
    %v411 = vpop.f32.mrb[0].mxu0
    %v412 = vadd.f32 %v122, %v411
    %v413 = vpop.f32.mrb[0].mxu0
    %v414 = vadd.f32 %v118, %v413
    %v415 = vpop.f32.mrb[0].mxu0
    %v416 = vadd.f32 %v122, %v415
    %417 = vmatprep.mubr.bf16.mxu0 0
    %418 = vmatmul.mubr.bf16.gmra.mrb[0].mxu0 %v207
    %v419 = vpop.f32.mrb[0].mxu0
    %v420 = vadd.f32 %v118, %v419
    %v421 = vpop.f32.mrb[0].mxu0
    %v422 = vadd.f32 %v122, %v421
    %v423 = vpop.f32.mrb[0].mxu0
    %v424 = vadd.f32 %v118, %v423
    %v425 = vpop.f32.mrb[0].mxu0
    %v426 = vadd.f32 %v122, %v425
    %427 = vmatprep.mubr.bf16.mxu0 0
    %428 = vmatmul.mubr.bf16.gmra.mrb[0].mxu0 %v210
    %v429 = vpop.f32.mrb[0].mxu0
    %v430 = vadd.f32 %v118, %v429
    %v431 = vpop.f32.mrb[0].mxu0
    %v432 = vadd.f32 %v122, %v431
    %v433 = vpop.f32.mrb[0].mxu0
    %v434 = vadd.f32 %v118, %v433
    %v435 = vpop.f32.mrb[0].mxu0
    %v436 = vadd.f32 %v122, %v435
    %437 = vdwg.mxu0
    %v438 = vmax.f32 %v247, 0.0
    %v439 = vmax.f32 %v249, 0.0
    %v440 = vmax.f32 %v360, 0.0
    %v441 = vmax.f32 %v362, 0.0
    %v442 = vmax.f32 %v251, 0.0
    %v443 = vmax.f32 %v253, 0.0
    %v444 = vmax.f32 %v364, 0.0
    %v445 = vmax.f32 %v366, 0.0
    %v446 = vmax.f32 %v257, 0.0
    %v447 = vmax.f32 %v259, 0.0
    %v448 = vmax.f32 %v370, 0.0
    %v449 = vmax.f32 %v372, 0.0
    %v450 = vmax.f32 %v261, 0.0
    %v451 = vmax.f32 %v263, 0.0
    %v452 = vmax.f32 %v374, 0.0
    %v453 = vmax.f32 %v376, 0.0
    %v454 = vmax.f32 %v267, 0.0
    %v455 = vmax.f32 %v269, 0.0
    %v456 = vmax.f32 %v380, 0.0
    %v457 = vmax.f32 %v382, 0.0
    %v458 = vmax.f32 %v271, 0.0
    %v459 = vmax.f32 %v273, 0.0
    %v460 = vmax.f32 %v384, 0.0
    %v461 = vmax.f32 %v386, 0.0
    %v462 = vmax.f32 %v277, 0.0
    %v463 = vmax.f32 %v279, 0.0
    %v464 = vmax.f32 %v390, 0.0
    %v465 = vmax.f32 %v392, 0.0
    %v466 = vmax.f32 %v281, 0.0
    %v467 = vmax.f32 %v283, 0.0
    %v468 = vmax.f32 %v394, 0.0
    %v469 = vmax.f32 %v396, 0.0
    %v470 = vmax.f32 %v287, 0.0
    %v471 = vmax.f32 %v289, 0.0
    %v472 = vmax.f32 %v400, 0.0
    %v473 = vmax.f32 %v402, 0.0
    %v474 = vmax.f32 %v291, 0.0
    %v475 = vmax.f32 %v293, 0.0
    %v476 = vmax.f32 %v404, 0.0
    %v477 = vmax.f32 %v406, 0.0
    %v478 = vmax.f32 %v297, 0.0
    %v479 = vmax.f32 %v299, 0.0
    %v480 = vmax.f32 %v410, 0.0
    %v481 = vmax.f32 %v412, 0.0
    %v482 = vmax.f32 %v301, 0.0
    %v483 = vmax.f32 %v303, 0.0
    %v484 = vmax.f32 %v414, 0.0
    %v485 = vmax.f32 %v416, 0.0
    %v486 = vmax.f32 %v307, 0.0
    %v487 = vmax.f32 %v309, 0.0
    %v488 = vmax.f32 %v420, 0.0
    %v489 = vmax.f32 %v422, 0.0
    %v490 = vmax.f32 %v311, 0.0
    %v491 = vmax.f32 %v313, 0.0
    %v492 = vmax.f32 %v424, 0.0
    %v493 = vmax.f32 %v426, 0.0
    %v494 = vmax.f32 %v317, 0.0
    %v495 = vmax.f32 %v319, 0.0
    %v496 = vmax.f32 %v430, 0.0
    %v497 = vmax.f32 %v432, 0.0
    %v498 = vmax.f32 %v321, 0.0
    %v499 = vmax.f32 %v323, 0.0
    %v500 = vmax.f32 %v434, 0.0
    %v501 = vmax.f32 %v436, 0.0
    %v502 = vpack.c.bf16 %v442, %v438
    %v503 = vpack.c.bf16 %v443, %v439
    %v504 = vpack.c.bf16 %v444, %v440
    %v505 = vpack.c.bf16 %v445, %v441
    %v506 = vpack.c.bf16 %v450, %v446
    %v507 = vpack.c.bf16 %v451, %v447
    %v508 = vpack.c.bf16 %v452, %v448
    %v509 = vpack.c.bf16 %v453, %v449
    %v510 = vpack.c.bf16 %v458, %v454
    %v511 = vpack.c.bf16 %v459, %v455
    %v512 = vpack.c.bf16 %v460, %v456
    %v513 = vpack.c.bf16 %v461, %v457
    %v514 = vpack.c.bf16 %v466, %v462
    %v515 = vpack.c.bf16 %v467, %v463
    %v516 = vpack.c.bf16 %v468, %v464
    %v517 = vpack.c.bf16 %v469, %v465
    %v518 = vpack.c.bf16 %v474, %v470
    %v519 = vpack.c.bf16 %v475, %v471
    %v520 = vpack.c.bf16 %v476, %v472
    %v521 = vpack.c.bf16 %v477, %v473
    %v522 = vpack.c.bf16 %v482, %v478
    %v523 = vpack.c.bf16 %v483, %v479
    %v524 = vpack.c.bf16 %v484, %v480
    %v525 = vpack.c.bf16 %v485, %v481
    %v526 = vpack.c.bf16 %v490, %v486
    %v527 = vpack.c.bf16 %v491, %v487
    %v528 = vpack.c.bf16 %v492, %v488
    %v529 = vpack.c.bf16 %v493, %v489
    %v530 = vpack.c.bf16 %v498, %v494
    %v531 = vpack.c.bf16 %v499, %v495
    %v532 = vpack.c.bf16 %v500, %v496
    %v533 = vpack.c.bf16 %v501, %v497
    %v534 = vld [vmem:[#allocation5] sm:$0xff]
    %v535 = vld [vmem:[#allocation5 + $0x8] sm:$0xff]
    %v536 = vld [vmem:[#allocation5 + $0x10] sm:$0xff]
    %v537 = vld [vmem:[#allocation5 + $0x18] sm:$0xff]
    %v538 = vld [vmem:[#allocation5 + $0x20] sm:$0xff]
    %v539 = vld [vmem:[#allocation5 + $0x28] sm:$0xff]
    %v540 = vld [vmem:[#allocation5 + $0x30] sm:$0xff]
    %v541 = vld [vmem:[#allocation5 + $0x38] sm:$0xff]
    %v542 = vld [vmem:[#allocation5 + $0x40] sm:$0xff]
    %v543 = vld [vmem:[#allocation5 + $0x48] sm:$0xff]
    %v544 = vld [vmem:[#allocation5 + $0x50] sm:$0xff]
    %v545 = vld [vmem:[#allocation5 + $0x58] sm:$0xff]
    %v546 = vld [vmem:[#allocation5 + $0x60] sm:$0xff]
    %v547 = vld [vmem:[#allocation5 + $0x68] sm:$0xff]
    %v548 = vld [vmem:[#allocation5 + $0x70] sm:$0xff]
    %v549 = vld [vmem:[#allocation5 + $0x78] sm:$0xff]
    %v550 = vld [vmem:[#allocation5 + $0x80] sm:$0xff]
    %v551 = vld [vmem:[#allocation5 + $0x88] sm:$0xff]
    %v552 = vld [vmem:[#allocation5 + $0x90] sm:$0xff]
    %v553 = vld [vmem:[#allocation5 + $0x98] sm:$0xff]
    %v554 = vld [vmem:[#allocation5 + $0xa0] sm:$0xff]
    %v555 = vld [vmem:[#allocation5 + $0xa8] sm:$0xff]
    %v556 = vld [vmem:[#allocation5 + $0xb0] sm:$0xff]
    %v557 = vld [vmem:[#allocation5 + $0xb8] sm:$0xff]
    %v558 = vld [vmem:[#allocation5 + $0xc0] sm:$0xff]
    %v559 = vld [vmem:[#allocation5 + $0xc8] sm:$0xff]
    %v560 = vld [vmem:[#allocation5 + $0xd0] sm:$0xff]
    %v561 = vld [vmem:[#allocation5 + $0xd8] sm:$0xff]
    %v562 = vld [vmem:[#allocation5 + $0xe0] sm:$0xff]
    %v563 = vld [vmem:[#allocation5 + $0xe8] sm:$0xff]
    %v564 = vld [vmem:[#allocation5 + $0xf0] sm:$0xff]
    %v565 = vld [vmem:[#allocation5 + $0xf8] sm:$0xff]
    %v566 = vld [vmem:[#allocation5 + $0x100] sm:$0xff]
    %v567 = vld [vmem:[#allocation5 + $0x108] sm:$0xff]
    %v568 = vld [vmem:[#allocation5 + $0x110] sm:$0xff]
    %v569 = vld [vmem:[#allocation5 + $0x118] sm:$0xff]
    %v570 = vld [vmem:[#allocation5 + $0x120] sm:$0xff]
    %v571 = vld [vmem:[#allocation5 + $0x128] sm:$0xff]
    %v572 = vld [vmem:[#allocation5 + $0x130] sm:$0xff]
    %v573 = vld [vmem:[#allocation5 + $0x138] sm:$0xff]
    %v574 = vld [vmem:[#allocation5 + $0x140] sm:$0xff]
    %v575 = vld [vmem:[#allocation5 + $0x148] sm:$0xff]
    %v576 = vld [vmem:[#allocation5 + $0x150] sm:$0xff]
    %v577 = vld [vmem:[#allocation5 + $0x158] sm:$0xff]
    %v578 = vld [vmem:[#allocation5 + $0x160] sm:$0xff]
    %v579 = vld [vmem:[#allocation5 + $0x168] sm:$0xff]
    %v580 = vld [vmem:[#allocation5 + $0x170] sm:$0xff]
    %v581 = vld [vmem:[#allocation5 + $0x178] sm:$0xff]
    %v582 = vld [vmem:[#allocation5 + $0x180] sm:$0xff]
    %v583 = vld [vmem:[#allocation5 + $0x188] sm:$0xff]
    %v584 = vld [vmem:[#allocation5 + $0x190] sm:$0xff]
    %v585 = vld [vmem:[#allocation5 + $0x198] sm:$0xff]
    %v586 = vld [vmem:[#allocation5 + $0x1a0] sm:$0xff]
    %v587 = vld [vmem:[#allocation5 + $0x1a8] sm:$0xff]
    %v588 = vld [vmem:[#allocation5 + $0x1b0] sm:$0xff]
    %v589 = vld [vmem:[#allocation5 + $0x1b8] sm:$0xff]
    %v590 = vld [vmem:[#allocation5 + $0x1c0] sm:$0xff]
    %v591 = vld [vmem:[#allocation5 + $0x1c8] sm:$0xff]
    %v592 = vld [vmem:[#allocation5 + $0x1d0] sm:$0xff]
    %v593 = vld [vmem:[#allocation5 + $0x1d8] sm:$0xff]
    %v594 = vld [vmem:[#allocation5 + $0x1e0] sm:$0xff]
    %v595 = vld [vmem:[#allocation5 + $0x1e8] sm:$0xff]
    %v596 = vld [vmem:[#allocation5 + $0x1f0] sm:$0xff]
    %v597 = vld [vmem:[#allocation5 + $0x1f8] sm:$0xff]
    %v598 = vld [vmem:[%s4] sm:$0x3]
    %v600 = vlaneseq
    %v601 = vshrl.u32 %v600, 7
    %v602 = vsub.s32 0, %v601
    %v603 = vrot.slane %v598, %v602
    %v604 = vlaneseq
    %v605 = vshrl.u32 %v604, 7
    %v606 = vsub.s32 1, %v605
    %v607 = vrot.slane %v598, %v606
    %v674 = vunpack.c.l.b16 %v534
    %v675 = vunpack.c.h.b16 %v534
    %v676 = vunpack.c.l.b16 %v535
    %v677 = vunpack.c.h.b16 %v535
    %v678 = vunpack.c.l.b16 %v536
    %v679 = vunpack.c.h.b16 %v536
    %v680 = vunpack.c.l.b16 %v537
    %v681 = vunpack.c.h.b16 %v537
    %v682 = vunpack.c.l.b16 %v538
    %v683 = vunpack.c.h.b16 %v538
    %v684 = vunpack.c.l.b16 %v539
    %v685 = vunpack.c.h.b16 %v539
    %v686 = vunpack.c.l.b16 %v540
    %v687 = vunpack.c.h.b16 %v540
    %v688 = vunpack.c.l.b16 %v541
    %v689 = vunpack.c.h.b16 %v541
    %v690 = vunpack.c.l.b16 %v542
    %v691 = vunpack.c.h.b16 %v542
    %v692 = vunpack.c.l.b16 %v543
    %v693 = vunpack.c.h.b16 %v543
    %v694 = vunpack.c.l.b16 %v544
    %v695 = vunpack.c.h.b16 %v544
    %v696 = vunpack.c.l.b16 %v545
    %v697 = vunpack.c.h.b16 %v545
    %v698 = vunpack.c.l.b16 %v546
    %v699 = vunpack.c.h.b16 %v546
    %v700 = vunpack.c.l.b16 %v547
    %v701 = vunpack.c.h.b16 %v547
    %v702 = vunpack.c.l.b16 %v548
    %v703 = vunpack.c.h.b16 %v548
    %v704 = vunpack.c.l.b16 %v549
    %v705 = vunpack.c.h.b16 %v549
    %v706 = vunpack.c.l.b16 %v550
    %v707 = vunpack.c.h.b16 %v550
    %v708 = vunpack.c.l.b16 %v551
    %v709 = vunpack.c.h.b16 %v551
    %v710 = vunpack.c.l.b16 %v552
    %v711 = vunpack.c.h.b16 %v552
    %v712 = vunpack.c.l.b16 %v553
    %v713 = vunpack.c.h.b16 %v553
    %v714 = vunpack.c.l.b16 %v554
    %v715 = vunpack.c.h.b16 %v554
    %v716 = vunpack.c.l.b16 %v555
    %v717 = vunpack.c.h.b16 %v555
    %v718 = vunpack.c.l.b16 %v556
    %v719 = vunpack.c.h.b16 %v556
    %v720 = vunpack.c.l.b16 %v557
    %v721 = vunpack.c.h.b16 %v557
    %v722 = vunpack.c.l.b16 %v558
    %v723 = vunpack.c.h.b16 %v558
    %v724 = vunpack.c.l.b16 %v559
    %v725 = vunpack.c.h.b16 %v559
    %v726 = vunpack.c.l.b16 %v560
    %v727 = vunpack.c.h.b16 %v560
    %v728 = vunpack.c.l.b16 %v561
    %v729 = vunpack.c.h.b16 %v561
    %v730 = vunpack.c.l.b16 %v562
    %v731 = vunpack.c.h.b16 %v562
    %v732 = vunpack.c.l.b16 %v563
    %v733 = vunpack.c.h.b16 %v563
    %v734 = vunpack.c.l.b16 %v564
    %v735 = vunpack.c.h.b16 %v564
    %v736 = vunpack.c.l.b16 %v565
    %v737 = vunpack.c.h.b16 %v565
    %v738 = vunpack.c.l.b16 %v566
    %v739 = vunpack.c.h.b16 %v566
    %v740 = vunpack.c.l.b16 %v567
    %v741 = vunpack.c.h.b16 %v567
    %v742 = vunpack.c.l.b16 %v568
    %v743 = vunpack.c.h.b16 %v568
    %v744 = vunpack.c.l.b16 %v569
    %v745 = vunpack.c.h.b16 %v569
    %v746 = vunpack.c.l.b16 %v570
    %v747 = vunpack.c.h.b16 %v570
    %v748 = vunpack.c.l.b16 %v571
    %v749 = vunpack.c.h.b16 %v571
    %v750 = vunpack.c.l.b16 %v572
    %v751 = vunpack.c.h.b16 %v572
    %v752 = vunpack.c.l.b16 %v573
    %v753 = vunpack.c.h.b16 %v573
    %v754 = vunpack.c.l.b16 %v574
    %v755 = vunpack.c.h.b16 %v574
    %v756 = vunpack.c.l.b16 %v575
    %v757 = vunpack.c.h.b16 %v575
    %v758 = vunpack.c.l.b16 %v576
    %v759 = vunpack.c.h.b16 %v576
    %v760 = vunpack.c.l.b16 %v577
    %v761 = vunpack.c.h.b16 %v577
    %v762 = vunpack.c.l.b16 %v578
    %v763 = vunpack.c.h.b16 %v578
    %v764 = vunpack.c.l.b16 %v579
    %v765 = vunpack.c.h.b16 %v579
    %v766 = vunpack.c.l.b16 %v580
    %v767 = vunpack.c.h.b16 %v580
    %v768 = vunpack.c.l.b16 %v581
    %v769 = vunpack.c.h.b16 %v581
    %v770 = vunpack.c.l.b16 %v582
    %v771 = vunpack.c.h.b16 %v582
    %v772 = vunpack.c.l.b16 %v583
    %v773 = vunpack.c.h.b16 %v583
    %v774 = vunpack.c.l.b16 %v584
    %v775 = vunpack.c.h.b16 %v584
    %v776 = vunpack.c.l.b16 %v585
    %v777 = vunpack.c.h.b16 %v585
    %v778 = vunpack.c.l.b16 %v586
    %v779 = vunpack.c.h.b16 %v586
    %v780 = vunpack.c.l.b16 %v587
    %v781 = vunpack.c.h.b16 %v587
    %v782 = vunpack.c.l.b16 %v588
    %v783 = vunpack.c.h.b16 %v588
    %v784 = vunpack.c.l.b16 %v589
    %v785 = vunpack.c.h.b16 %v589
    %v786 = vunpack.c.l.b16 %v590
    %v787 = vunpack.c.h.b16 %v590
    %v788 = vunpack.c.l.b16 %v591
    %v789 = vunpack.c.h.b16 %v591
    %v790 = vunpack.c.l.b16 %v592
    %v791 = vunpack.c.h.b16 %v592
    %v792 = vunpack.c.l.b16 %v593
    %v793 = vunpack.c.h.b16 %v593
    %v794 = vunpack.c.l.b16 %v594
    %v795 = vunpack.c.h.b16 %v594
    %v796 = vunpack.c.l.b16 %v595
    %v797 = vunpack.c.h.b16 %v595
    %v798 = vunpack.c.l.b16 %v596
    %v799 = vunpack.c.h.b16 %v596
    %v800 = vunpack.c.l.b16 %v597
    %v801 = vunpack.c.h.b16 %v597
    %v802 = vpack.c.b16 %v676, %v674
    %v803 = vpack.c.b16 %v677, %v675
    %v804 = vpack.c.b16 %v680, %v678
    %v805 = vpack.c.b16 %v681, %v679
    %v806 = vpack.c.b16 %v684, %v682
    %v807 = vpack.c.b16 %v685, %v683
    %v808 = vpack.c.b16 %v688, %v686
    %v809 = vpack.c.b16 %v689, %v687
    %v810 = vpack.c.b16 %v692, %v690
    %v811 = vpack.c.b16 %v693, %v691
    %v812 = vpack.c.b16 %v696, %v694
    %v813 = vpack.c.b16 %v697, %v695
    %v814 = vpack.c.b16 %v700, %v698
    %v815 = vpack.c.b16 %v701, %v699
    %v816 = vpack.c.b16 %v704, %v702
    %v817 = vpack.c.b16 %v705, %v703
    %v818 = vpack.c.b16 %v708, %v706
    %v819 = vpack.c.b16 %v709, %v707
    %v820 = vpack.c.b16 %v712, %v710
    %v821 = vpack.c.b16 %v713, %v711
    %v822 = vpack.c.b16 %v716, %v714
    %v823 = vpack.c.b16 %v717, %v715
    %v824 = vpack.c.b16 %v720, %v718
    %v825 = vpack.c.b16 %v721, %v719
    %v826 = vpack.c.b16 %v724, %v722
    %v827 = vpack.c.b16 %v725, %v723
    %v828 = vpack.c.b16 %v728, %v726
    %v829 = vpack.c.b16 %v729, %v727
    %v830 = vpack.c.b16 %v732, %v730
    %v831 = vpack.c.b16 %v733, %v731
    %v832 = vpack.c.b16 %v736, %v734
    %v833 = vpack.c.b16 %v737, %v735
    %v834 = vpack.c.b16 %v740, %v738
    %v835 = vpack.c.b16 %v741, %v739
    %v836 = vpack.c.b16 %v744, %v742
    %v837 = vpack.c.b16 %v745, %v743
    %v838 = vpack.c.b16 %v748, %v746
    %v839 = vpack.c.b16 %v749, %v747
    %v840 = vpack.c.b16 %v752, %v750
    %v841 = vpack.c.b16 %v753, %v751
    %v842 = vpack.c.b16 %v756, %v754
    %v843 = vpack.c.b16 %v757, %v755
    %v844 = vpack.c.b16 %v760, %v758
    %v845 = vpack.c.b16 %v761, %v759
    %v846 = vpack.c.b16 %v764, %v762
    %v847 = vpack.c.b16 %v765, %v763
    %v848 = vpack.c.b16 %v768, %v766
    %v849 = vpack.c.b16 %v769, %v767
    %v850 = vpack.c.b16 %v772, %v770
    %v851 = vpack.c.b16 %v773, %v771
    %v852 = vpack.c.b16 %v776, %v774
    %v853 = vpack.c.b16 %v777, %v775
    %v854 = vpack.c.b16 %v780, %v778
    %v855 = vpack.c.b16 %v781, %v779
    %v856 = vpack.c.b16 %v784, %v782
    %v857 = vpack.c.b16 %v785, %v783
    %v858 = vpack.c.b16 %v788, %v786
    %v859 = vpack.c.b16 %v789, %v787
    %v860 = vpack.c.b16 %v792, %v790
    %v861 = vpack.c.b16 %v793, %v791
    %v862 = vpack.c.b16 %v796, %v794
    %v863 = vpack.c.b16 %v797, %v795
    %v864 = vpack.c.b16 %v800, %v798
    %v865 = vpack.c.b16 %v801, %v799
    %930 = vmatprep.subr.bf16.mxu0 %v803
    %931 = vmatpush1.bf16.msra.mxu0 %v802
    %932 = vmatprep.subr.bf16.mxu0 %v805
    %933 = vmatpush1.bf16.msra.mxu0 %v804
    %934 = vmatprep.subr.bf16.mxu0 %v807
    %935 = vmatpush1.bf16.msra.mxu0 %v806
    %936 = vmatprep.subr.bf16.mxu0 %v809
    %937 = vmatpush1.bf16.msra.mxu0 %v808
    %938 = vmatprep.subr.bf16.mxu0 %v811
    %939 = vmatpush1.bf16.msra.mxu0 %v810
    %940 = vmatprep.subr.bf16.mxu0 %v813
    %941 = vmatpush1.bf16.msra.mxu0 %v812
    %942 = vmatprep.subr.bf16.mxu0 %v815
    %943 = vmatpush1.bf16.msra.mxu0 %v814
    %944 = vmatprep.subr.bf16.mxu0 %v817
    %945 = vmatpush1.bf16.msra.mxu0 %v816
    %946 = vmatprep.subr.bf16.mxu0 %v819
    %947 = vmatpush1.bf16.msra.mxu0 %v818
    %948 = vmatprep.subr.bf16.mxu0 %v821
    %949 = vmatpush1.bf16.msra.mxu0 %v820
    %950 = vmatprep.subr.bf16.mxu0 %v823
    %951 = vmatpush1.bf16.msra.mxu0 %v822
    %952 = vmatprep.subr.bf16.mxu0 %v825
    %953 = vmatpush1.bf16.msra.mxu0 %v824
    %954 = vmatprep.subr.bf16.mxu0 %v827
    %955 = vmatpush1.bf16.msra.mxu0 %v826
    %956 = vmatprep.subr.bf16.mxu0 %v829
    %957 = vmatpush1.bf16.msra.mxu0 %v828
    %958 = vmatprep.subr.bf16.mxu0 %v831
    %959 = vmatpush1.bf16.msra.mxu0 %v830
    %960 = vmatprep.subr.bf16.mxu0 %v833
    %961 = vmatpush1.bf16.msra.mxu0 %v832
    %962 = vmatprep.mubr.bf16.mxu0 %v503
    %963 = vmatmul.mubr.bf16.gmra.mrb[0].mxu0 %v502
    %v964 = vpop.f32.mrb[0].mxu0
    %v965 = vadd.f32 %v603, %v964
    %v966 = vpop.f32.mrb[0].mxu0
    %v967 = vadd.f32 %v607, %v966
    %v968 = vpop.f32.mrb[0].mxu0
    %v969 = vadd.f32 %v603, %v968
    %v970 = vpop.f32.mrb[0].mxu0
    %v971 = vadd.f32 %v607, %v970
    %972 = vmatprep.mubr.bf16.mxu0 %v507
    %973 = vmatmul.mubr.bf16.gmra.mrb[0].mxu0 %v506
    %v974 = vpop.f32.mrb[0].mxu0
    %v975 = vadd.f32 %v603, %v974
    %v976 = vpop.f32.mrb[0].mxu0
    %v977 = vadd.f32 %v607, %v976
    %v978 = vpop.f32.mrb[0].mxu0
    %v979 = vadd.f32 %v603, %v978
    %v980 = vpop.f32.mrb[0].mxu0
    %v981 = vadd.f32 %v607, %v980
    %982 = vmatprep.mubr.bf16.mxu0 %v511
    %983 = vmatmul.mubr.bf16.gmra.mrb[0].mxu0 %v510
    %v984 = vpop.f32.mrb[0].mxu0
    %v985 = vadd.f32 %v603, %v984
    %v986 = vpop.f32.mrb[0].mxu0
    %v987 = vadd.f32 %v607, %v986
    %v988 = vpop.f32.mrb[0].mxu0
    %v989 = vadd.f32 %v603, %v988
    %v990 = vpop.f32.mrb[0].mxu0
    %v991 = vadd.f32 %v607, %v990
    %992 = vmatprep.mubr.bf16.mxu0 %v515
    %993 = vmatmul.mubr.bf16.gmra.mrb[0].mxu0 %v514
    %v994 = vpop.f32.mrb[0].mxu0
    %v995 = vadd.f32 %v603, %v994
    %v996 = vpop.f32.mrb[0].mxu0
    %v997 = vadd.f32 %v607, %v996
    %v998 = vpop.f32.mrb[0].mxu0
    %v999 = vadd.f32 %v603, %v998
    %v1000 = vpop.f32.mrb[0].mxu0
    %v1001 = vadd.f32 %v607, %v1000
    %1002 = vmatprep.mubr.bf16.mxu0 %v519
    %1003 = vmatmul.mubr.bf16.gmra.mrb[0].mxu0 %v518
    %v1004 = vpop.f32.mrb[0].mxu0
    %v1005 = vadd.f32 %v603, %v1004
    %v1006 = vpop.f32.mrb[0].mxu0
    %v1007 = vadd.f32 %v607, %v1006
    %v1008 = vpop.f32.mrb[0].mxu0
    %v1009 = vadd.f32 %v603, %v1008
    %v1010 = vpop.f32.mrb[0].mxu0
    %v1011 = vadd.f32 %v607, %v1010
    %1012 = vmatprep.mubr.bf16.mxu0 %v523
    %1013 = vmatmul.mubr.bf16.gmra.mrb[0].mxu0 %v522
    %v1014 = vpop.f32.mrb[0].mxu0
    %v1015 = vadd.f32 %v603, %v1014
    %v1016 = vpop.f32.mrb[0].mxu0
    %v1017 = vadd.f32 %v607, %v1016
    %v1018 = vpop.f32.mrb[0].mxu0
    %v1019 = vadd.f32 %v603, %v1018
    %v1020 = vpop.f32.mrb[0].mxu0
    %v1021 = vadd.f32 %v607, %v1020
    %1022 = vmatprep.mubr.bf16.mxu0 %v527
    %1023 = vmatmul.mubr.bf16.gmra.mrb[0].mxu0 %v526
    %v1024 = vpop.f32.mrb[0].mxu0
    %v1025 = vadd.f32 %v603, %v1024
    %v1026 = vpop.f32.mrb[0].mxu0
    %v1027 = vadd.f32 %v607, %v1026
    %v1028 = vpop.f32.mrb[0].mxu0
    %v1029 = vadd.f32 %v603, %v1028
    %v1030 = vpop.f32.mrb[0].mxu0
    %v1031 = vadd.f32 %v607, %v1030
    %1032 = vmatprep.mubr.bf16.mxu0 %v531
    %1033 = vmatmul.mubr.bf16.gmra.mrb[0].mxu0 %v530
    %v1034 = vpop.f32.mrb[0].mxu0
    %v1035 = vadd.f32 %v603, %v1034
    %v1036 = vpop.f32.mrb[0].mxu0
    %v1037 = vadd.f32 %v607, %v1036
    %v1038 = vpop.f32.mrb[0].mxu0
    %v1039 = vadd.f32 %v603, %v1038
    %v1040 = vpop.f32.mrb[0].mxu0
    %v1041 = vadd.f32 %v607, %v1040
    %1042 = vdwg.mxu0
    %1043 = vmatprep.subr.bf16.mxu0 %v835
    %1044 = vmatpush1.bf16.msra.mxu0 %v834
    %1045 = vmatprep.subr.bf16.mxu0 %v837
    %1046 = vmatpush1.bf16.msra.mxu0 %v836
    %1047 = vmatprep.subr.bf16.mxu0 %v839
    %1048 = vmatpush1.bf16.msra.mxu0 %v838
    %1049 = vmatprep.subr.bf16.mxu0 %v841
    %1050 = vmatpush1.bf16.msra.mxu0 %v840
    %1051 = vmatprep.subr.bf16.mxu0 %v843
    %1052 = vmatpush1.bf16.msra.mxu0 %v842
    %1053 = vmatprep.subr.bf16.mxu0 %v845
    %1054 = vmatpush1.bf16.msra.mxu0 %v844
    %1055 = vmatprep.subr.bf16.mxu0 %v847
    %1056 = vmatpush1.bf16.msra.mxu0 %v846
    %1057 = vmatprep.subr.bf16.mxu0 %v849
    %1058 = vmatpush1.bf16.msra.mxu0 %v848
    %1059 = vmatprep.subr.bf16.mxu0 %v851
    %1060 = vmatpush1.bf16.msra.mxu0 %v850
    %1061 = vmatprep.subr.bf16.mxu0 %v853
    %1062 = vmatpush1.bf16.msra.mxu0 %v852
    %1063 = vmatprep.subr.bf16.mxu0 %v855
    %1064 = vmatpush1.bf16.msra.mxu0 %v854
    %1065 = vmatprep.subr.bf16.mxu0 %v857
    %1066 = vmatpush1.bf16.msra.mxu0 %v856
    %1067 = vmatprep.subr.bf16.mxu0 %v859
    %1068 = vmatpush1.bf16.msra.mxu0 %v858
    %1069 = vmatprep.subr.bf16.mxu0 %v861
    %1070 = vmatpush1.bf16.msra.mxu0 %v860
    %1071 = vmatprep.subr.bf16.mxu0 %v863
    %1072 = vmatpush1.bf16.msra.mxu0 %v862
    %1073 = vmatprep.subr.bf16.mxu0 %v865
    %1074 = vmatpush1.bf16.msra.mxu0 %v864
    %1075 = vmatprep.mubr.bf16.mxu0 %v505
    %1076 = vmatmul.mubr.bf16.gmra.mrb[0].mxu0 %v504
    %v1077 = vpop.f32.mrb[0].mxu0
    %v1078 = vadd.f32 %v965, %v1077
    %v1079 = vpop.f32.mrb[0].mxu0
    %v1080 = vadd.f32 %v967, %v1079
    %v1081 = vpop.f32.mrb[0].mxu0
    %v1082 = vadd.f32 %v969, %v1081
    %v1083 = vpop.f32.mrb[0].mxu0
    %v1084 = vadd.f32 %v971, %v1083
    %1085 = vmatprep.mubr.bf16.mxu0 %v509
    %1086 = vmatmul.mubr.bf16.gmra.mrb[0].mxu0 %v508
    %v1087 = vpop.f32.mrb[0].mxu0
    %v1088 = vadd.f32 %v975, %v1087
    %v1089 = vpop.f32.mrb[0].mxu0
    %v1090 = vadd.f32 %v977, %v1089
    %v1091 = vpop.f32.mrb[0].mxu0
    %v1092 = vadd.f32 %v979, %v1091
    %v1093 = vpop.f32.mrb[0].mxu0
    %v1094 = vadd.f32 %v981, %v1093
    %1095 = vmatprep.mubr.bf16.mxu0 %v513
    %1096 = vmatmul.mubr.bf16.gmra.mrb[0].mxu0 %v512
    %v1097 = vpop.f32.mrb[0].mxu0
    %v1098 = vadd.f32 %v985, %v1097
    %v1099 = vpop.f32.mrb[0].mxu0
    %v1100 = vadd.f32 %v987, %v1099
    %v1101 = vpop.f32.mrb[0].mxu0
    %v1102 = vadd.f32 %v989, %v1101
    %v1103 = vpop.f32.mrb[0].mxu0
    %v1104 = vadd.f32 %v991, %v1103
    %1105 = vmatprep.mubr.bf16.mxu0 %v517
    %1106 = vmatmul.mubr.bf16.gmra.mrb[0].mxu0 %v516
    %v1107 = vpop.f32.mrb[0].mxu0
    %v1108 = vadd.f32 %v995, %v1107
    %v1109 = vpop.f32.mrb[0].mxu0
    %v1110 = vadd.f32 %v997, %v1109
    %v1111 = vpop.f32.mrb[0].mxu0
    %v1112 = vadd.f32 %v999, %v1111
    %v1113 = vpop.f32.mrb[0].mxu0
    %v1114 = vadd.f32 %v1001, %v1113
    %1115 = vmatprep.mubr.bf16.mxu0 %v521
    %1116 = vmatmul.mubr.bf16.gmra.mrb[0].mxu0 %v520
    %v1117 = vpop.f32.mrb[0].mxu0
    %v1118 = vadd.f32 %v1005, %v1117
    %v1119 = vpop.f32.mrb[0].mxu0
    %v1120 = vadd.f32 %v1007, %v1119
    %v1121 = vpop.f32.mrb[0].mxu0
    %v1122 = vadd.f32 %v1009, %v1121
    %v1123 = vpop.f32.mrb[0].mxu0
    %v1124 = vadd.f32 %v1011, %v1123
    %1125 = vmatprep.mubr.bf16.mxu0 %v525
    %1126 = vmatmul.mubr.bf16.gmra.mrb[0].mxu0 %v524
    %v1127 = vpop.f32.mrb[0].mxu0
    %v1128 = vadd.f32 %v1015, %v1127
    %v1129 = vpop.f32.mrb[0].mxu0
    %v1130 = vadd.f32 %v1017, %v1129
    %v1131 = vpop.f32.mrb[0].mxu0
    %v1132 = vadd.f32 %v1019, %v1131
    %v1133 = vpop.f32.mrb[0].mxu0
    %v1134 = vadd.f32 %v1021, %v1133
    %1135 = vmatprep.mubr.bf16.mxu0 %v529
    %1136 = vmatmul.mubr.bf16.gmra.mrb[0].mxu0 %v528
    %v1137 = vpop.f32.mrb[0].mxu0
    %v1138 = vadd.f32 %v1025, %v1137
    %v1139 = vpop.f32.mrb[0].mxu0
    %v1140 = vadd.f32 %v1027, %v1139
    %v1141 = vpop.f32.mrb[0].mxu0
    %v1142 = vadd.f32 %v1029, %v1141
    %v1143 = vpop.f32.mrb[0].mxu0
    %v1144 = vadd.f32 %v1031, %v1143
    %1145 = vmatprep.mubr.bf16.mxu0 %v533
    %1146 = vmatmul.mubr.bf16.gmra.mrb[0].mxu0 %v532
    %v1147 = vpop.f32.mrb[0].mxu0
    %v1148 = vadd.f32 %v1035, %v1147
    %v1149 = vpop.f32.mrb[0].mxu0
    %v1150 = vadd.f32 %v1037, %v1149
    %v1151 = vpop.f32.mrb[0].mxu0
    %v1152 = vadd.f32 %v1039, %v1151
    %v1153 = vpop.f32.mrb[0].mxu0
    %v1154 = vadd.f32 %v1041, %v1153
    %1155 = vdwg.mxu0
    %v1156 = vmax.f32 %v1078, 0.0
    %v1157 = vmax.f32 %v1080, 0.0
    %v1158 = vmax.f32 %v1082, 0.0
    %v1159 = vmax.f32 %v1084, 0.0
    %v1160 = vmax.f32 %v1088, 0.0
    %v1161 = vmax.f32 %v1090, 0.0
    %v1162 = vmax.f32 %v1092, 0.0
    %v1163 = vmax.f32 %v1094, 0.0
    %v1164 = vmax.f32 %v1098, 0.0
    %v1165 = vmax.f32 %v1100, 0.0
    %v1166 = vmax.f32 %v1102, 0.0
    %v1167 = vmax.f32 %v1104, 0.0
    %v1168 = vmax.f32 %v1108, 0.0
    %v1169 = vmax.f32 %v1110, 0.0
    %v1170 = vmax.f32 %v1112, 0.0
    %v1171 = vmax.f32 %v1114, 0.0
    %v1172 = vmax.f32 %v1118, 0.0
    %v1173 = vmax.f32 %v1120, 0.0
    %v1174 = vmax.f32 %v1122, 0.0
    %v1175 = vmax.f32 %v1124, 0.0
    %v1176 = vmax.f32 %v1128, 0.0
    %v1177 = vmax.f32 %v1130, 0.0
    %v1178 = vmax.f32 %v1132, 0.0
    %v1179 = vmax.f32 %v1134, 0.0
    %v1180 = vmax.f32 %v1138, 0.0
    %v1181 = vmax.f32 %v1140, 0.0
    %v1182 = vmax.f32 %v1142, 0.0
    %v1183 = vmax.f32 %v1144, 0.0
    %v1184 = vmax.f32 %v1148, 0.0
    %v1185 = vmax.f32 %v1150, 0.0
    %v1186 = vmax.f32 %v1152, 0.0
    %v1187 = vmax.f32 %v1154, 0.0
    %v1188 = vpack.c.bf16 %v1158, %v1156
    %v1189 = vpack.c.bf16 %v1159, %v1157
    %v1190 = vpack.c.bf16 %v1162, %v1160
    %v1191 = vpack.c.bf16 %v1163, %v1161
    %v1192 = vpack.c.bf16 %v1166, %v1164
    %v1193 = vpack.c.bf16 %v1167, %v1165
    %v1194 = vpack.c.bf16 %v1170, %v1168
    %v1195 = vpack.c.bf16 %v1171, %v1169
    %v1196 = vpack.c.bf16 %v1174, %v1172
    %v1197 = vpack.c.bf16 %v1175, %v1173
    %v1198 = vpack.c.bf16 %v1178, %v1176
    %v1199 = vpack.c.bf16 %v1179, %v1177
    %v1200 = vpack.c.bf16 %v1182, %v1180
    %v1201 = vpack.c.bf16 %v1183, %v1181
    %v1202 = vpack.c.bf16 %v1186, %v1184
    %v1203 = vpack.c.bf16 %v1187, %v1185
    %v1204 = vld [vmem:[#allocation7] sm:$0xf]
    %v1205 = vld [vmem:[#allocation7 + $0x4] sm:$0xf]
    %v1206 = vld [vmem:[#allocation7 + $0x8] sm:$0xf]
    %v1207 = vld [vmem:[#allocation7 + $0xc] sm:$0xf]
    %v1208 = vld [vmem:[#allocation7 + $0x10] sm:$0xf]
    %v1209 = vld [vmem:[#allocation7 + $0x14] sm:$0xf]
    %v1210 = vld [vmem:[#allocation7 + $0x18] sm:$0xf]
    %v1211 = vld [vmem:[#allocation7 + $0x1c] sm:$0xf]
    %v1212 = vld [vmem:[#allocation7 + $0x20] sm:$0xf]
    %v1213 = vld [vmem:[#allocation7 + $0x24] sm:$0xf]
    %v1214 = vld [vmem:[#allocation7 + $0x28] sm:$0xf]
    %v1215 = vld [vmem:[#allocation7 + $0x2c] sm:$0xf]
    %v1216 = vld [vmem:[#allocation7 + $0x30] sm:$0xf]
    %v1217 = vld [vmem:[#allocation7 + $0x34] sm:$0xf]
    %v1218 = vld [vmem:[#allocation7 + $0x38] sm:$0xf]
    %v1219 = vld [vmem:[#allocation7 + $0x3c] sm:$0xf]
    %v1220 = vld [vmem:[#allocation7 + $0x40] sm:$0xf]
    %v1221 = vld [vmem:[#allocation7 + $0x44] sm:$0xf]
    %v1222 = vld [vmem:[#allocation7 + $0x48] sm:$0xf]
    %v1223 = vld [vmem:[#allocation7 + $0x4c] sm:$0xf]
    %v1224 = vld [vmem:[#allocation7 + $0x50] sm:$0xf]
    %v1225 = vld [vmem:[#allocation7 + $0x54] sm:$0xf]
    %v1226 = vld [vmem:[#allocation7 + $0x58] sm:$0xf]
    %v1227 = vld [vmem:[#allocation7 + $0x5c] sm:$0xf]
    %v1228 = vld [vmem:[#allocation7 + $0x60] sm:$0xf]
    %v1229 = vld [vmem:[#allocation7 + $0x64] sm:$0xf]
    %v1230 = vld [vmem:[#allocation7 + $0x68] sm:$0xf]
    %v1231 = vld [vmem:[#allocation7 + $0x6c] sm:$0xf]
    %v1232 = vld [vmem:[#allocation7 + $0x70] sm:$0xf]
    %v1233 = vld [vmem:[#allocation7 + $0x74] sm:$0xf]
    %v1234 = vld [vmem:[#allocation7 + $0x78] sm:$0xf]
    %v1235 = vld [vmem:[#allocation7 + $0x7c] sm:$0xf]
    %v1236 = vld [vmem:[#allocation8] sm:$0x1]
    %v1238 = vlaneseq
    %v1239 = vshrl.u32 %v1238, 7
    %v1240 = vsub.s32 0, %v1239
    %v1241 = vrot.slane %v1236, %v1240
    %v1275 = vunpack.c.l.b16 %v1204
    %v1276 = vunpack.c.l.b16 %v1205
    %v1277 = vunpack.c.l.b16 %v1206
    %v1278 = vunpack.c.l.b16 %v1207
    %v1279 = vunpack.c.l.b16 %v1208
    %v1280 = vunpack.c.l.b16 %v1209
    %v1281 = vunpack.c.l.b16 %v1210
    %v1282 = vunpack.c.l.b16 %v1211
    %v1283 = vunpack.c.l.b16 %v1212
    %v1284 = vunpack.c.l.b16 %v1213
    %v1285 = vunpack.c.l.b16 %v1214
    %v1286 = vunpack.c.l.b16 %v1215
    %v1287 = vunpack.c.l.b16 %v1216
    %v1288 = vunpack.c.l.b16 %v1217
    %v1289 = vunpack.c.l.b16 %v1218
    %v1290 = vunpack.c.l.b16 %v1219
    %v1291 = vunpack.c.l.b16 %v1220
    %v1292 = vunpack.c.l.b16 %v1221
    %v1293 = vunpack.c.l.b16 %v1222
    %v1294 = vunpack.c.l.b16 %v1223
    %v1295 = vunpack.c.l.b16 %v1224
    %v1296 = vunpack.c.l.b16 %v1225
    %v1297 = vunpack.c.l.b16 %v1226
    %v1298 = vunpack.c.l.b16 %v1227
    %v1299 = vunpack.c.l.b16 %v1228
    %v1300 = vunpack.c.l.b16 %v1229
    %v1301 = vunpack.c.l.b16 %v1230
    %v1302 = vunpack.c.l.b16 %v1231
    %v1303 = vunpack.c.l.b16 %v1232
    %v1304 = vunpack.c.l.b16 %v1233
    %v1305 = vunpack.c.l.b16 %v1234
    %v1306 = vunpack.c.l.b16 %v1235
    %v1307 = vpack.c.b16 %v1276, %v1275
    %v1308 = vpack.c.b16 %v1278, %v1277
    %v1309 = vpack.c.b16 %v1280, %v1279
    %v1310 = vpack.c.b16 %v1282, %v1281
    %v1311 = vpack.c.b16 %v1284, %v1283
    %v1312 = vpack.c.b16 %v1286, %v1285
    %v1313 = vpack.c.b16 %v1288, %v1287
    %v1314 = vpack.c.b16 %v1290, %v1289
    %v1315 = vpack.c.b16 %v1292, %v1291
    %v1316 = vpack.c.b16 %v1294, %v1293
    %v1317 = vpack.c.b16 %v1296, %v1295
    %v1318 = vpack.c.b16 %v1298, %v1297
    %v1319 = vpack.c.b16 %v1300, %v1299
    %v1320 = vpack.c.b16 %v1302, %v1301
    %v1321 = vpack.c.b16 %v1304, %v1303
    %v1322 = vpack.c.b16 %v1306, %v1305
    %1339 = vmatprep.subr.bf16.mxu0 0
    %1340 = vmatpush1.bf16.msra.mxu0 %v1307
    %1341 = vmatprep.subr.bf16.mxu0 0
    %1342 = vmatpush1.bf16.msra.mxu0 %v1308
    %1343 = vmatprep.subr.bf16.mxu0 0
    %1344 = vmatpush1.bf16.msra.mxu0 %v1309
    %1345 = vmatprep.subr.bf16.mxu0 0
    %1346 = vmatpush1.bf16.msra.mxu0 %v1310
    %1347 = vmatprep.subr.bf16.mxu0 0
    %1348 = vmatpush1.bf16.msra.mxu0 %v1311
    %1349 = vmatprep.subr.bf16.mxu0 0
    %1350 = vmatpush1.bf16.msra.mxu0 %v1312
    %1351 = vmatprep.subr.bf16.mxu0 0
    %1352 = vmatpush1.bf16.msra.mxu0 %v1313
    %1353 = vmatprep.subr.bf16.mxu0 0
    %1354 = vmatpush1.bf16.msra.mxu0 %v1314
    %1355 = vmatprep.subr.bf16.mxu0 0
    %1356 = vmatpush1.bf16.msra.mxu0 %v1315
    %1357 = vmatprep.subr.bf16.mxu0 0
    %1358 = vmatpush1.bf16.msra.mxu0 %v1316
    %1359 = vmatprep.subr.bf16.mxu0 0
    %1360 = vmatpush1.bf16.msra.mxu0 %v1317
    %1361 = vmatprep.subr.bf16.mxu0 0
    %1362 = vmatpush1.bf16.msra.mxu0 %v1318
    %1363 = vmatprep.subr.bf16.mxu0 0
    %1364 = vmatpush1.bf16.msra.mxu0 %v1319
    %1365 = vmatprep.subr.bf16.mxu0 0
    %1366 = vmatpush1.bf16.msra.mxu0 %v1320
    %1367 = vmatprep.subr.bf16.mxu0 0
    %1368 = vmatpush1.bf16.msra.mxu0 %v1321
    %1369 = vmatprep.subr.bf16.mxu0 0
    %1370 = vmatpush1.bf16.msra.mxu0 %v1322
    %1371 = vmatprep.mubr.bf16.mxu0 %v1189
    %1372 = vmatmul.mubr.bf16.gmra.mrb[0].mxu0 %v1188
    %v1373 = vpop.f32.mrb[0].mxu0
    %v1374 = vadd.f32 %v1241, %v1373
    %v1375 = vpop.f32.mrb[0].mxu0
    %v1376 = vpop.f32.mrb[0].mxu0
    %v1377 = vadd.f32 %v1241, %v1376
    %v1378 = vpop.f32.mrb[0].mxu0
    %1379 = vmatprep.mubr.bf16.mxu0 %v1191
    %1380 = vmatmul.mubr.bf16.gmra.mrb[0].mxu0 %v1190
    %v1381 = vpop.f32.mrb[0].mxu0
    %v1382 = vadd.f32 %v1241, %v1381
    %v1383 = vpop.f32.mrb[0].mxu0
    %v1384 = vpop.f32.mrb[0].mxu0
    %v1385 = vadd.f32 %v1241, %v1384
    %v1386 = vpop.f32.mrb[0].mxu0
    %1387 = vmatprep.mubr.bf16.mxu0 %v1193
    %1388 = vmatmul.mubr.bf16.gmra.mrb[0].mxu0 %v1192
    %v1389 = vpop.f32.mrb[0].mxu0
    %v1390 = vadd.f32 %v1241, %v1389
    %v1391 = vpop.f32.mrb[0].mxu0
    %v1392 = vpop.f32.mrb[0].mxu0
    %v1393 = vadd.f32 %v1241, %v1392
    %v1394 = vpop.f32.mrb[0].mxu0
    %1395 = vmatprep.mubr.bf16.mxu0 %v1195
    %1396 = vmatmul.mubr.bf16.gmra.mrb[0].mxu0 %v1194
    %v1397 = vpop.f32.mrb[0].mxu0
    %v1398 = vadd.f32 %v1241, %v1397
    %v1399 = vpop.f32.mrb[0].mxu0
    %v1400 = vpop.f32.mrb[0].mxu0
    %v1401 = vadd.f32 %v1241, %v1400
    %v1402 = vpop.f32.mrb[0].mxu0
    %1403 = vmatprep.mubr.bf16.mxu0 %v1197
    %1404 = vmatmul.mubr.bf16.gmra.mrb[0].mxu0 %v1196
    %v1405 = vpop.f32.mrb[0].mxu0
    %v1406 = vadd.f32 %v1241, %v1405
    %v1407 = vpop.f32.mrb[0].mxu0
    %v1408 = vpop.f32.mrb[0].mxu0
    %v1409 = vadd.f32 %v1241, %v1408
    %v1410 = vpop.f32.mrb[0].mxu0
    %1411 = vmatprep.mubr.bf16.mxu0 %v1199
    %1412 = vmatmul.mubr.bf16.gmra.mrb[0].mxu0 %v1198
    %v1413 = vpop.f32.mrb[0].mxu0
    %v1414 = vadd.f32 %v1241, %v1413
    %v1415 = vpop.f32.mrb[0].mxu0
    %v1416 = vpop.f32.mrb[0].mxu0
    %v1417 = vadd.f32 %v1241, %v1416
    %v1418 = vpop.f32.mrb[0].mxu0
    %1419 = vmatprep.mubr.bf16.mxu0 %v1201
    %1420 = vmatmul.mubr.bf16.gmra.mrb[0].mxu0 %v1200
    %v1421 = vpop.f32.mrb[0].mxu0
    %v1422 = vadd.f32 %v1241, %v1421
    %v1423 = vpop.f32.mrb[0].mxu0
    %v1424 = vpop.f32.mrb[0].mxu0
    %v1425 = vadd.f32 %v1241, %v1424
    %v1426 = vpop.f32.mrb[0].mxu0
    %1427 = vmatprep.mubr.bf16.mxu0 %v1203
    %1428 = vmatmul.mubr.bf16.gmra.mrb[0].mxu0 %v1202
    %v1429 = vpop.f32.mrb[0].mxu0
    %v1430 = vadd.f32 %v1241, %v1429
    %v1431 = vpop.f32.mrb[0].mxu0
    %v1432 = vpop.f32.mrb[0].mxu0
    %v1433 = vadd.f32 %v1241, %v1432
    %v1434 = vpop.f32.mrb[0].mxu0
    %1435 = vdwg.mxu0
    %v1436 = vmax.f32 %v1374, 0.0
    %v1437 = vmax.f32 %v1377, 0.0
    %v1438 = vmax.f32 %v1382, 0.0
    %v1439 = vmax.f32 %v1385, 0.0
    %v1440 = vmax.f32 %v1390, 0.0
    %v1441 = vmax.f32 %v1393, 0.0
    %v1442 = vmax.f32 %v1398, 0.0
    %v1443 = vmax.f32 %v1401, 0.0
    %v1444 = vmax.f32 %v1406, 0.0
    %v1445 = vmax.f32 %v1409, 0.0
    %v1446 = vmax.f32 %v1414, 0.0
    %v1447 = vmax.f32 %v1417, 0.0
    %v1448 = vmax.f32 %v1422, 0.0
    %v1449 = vmax.f32 %v1425, 0.0
    %v1450 = vmax.f32 %v1430, 0.0
    %v1451 = vmax.f32 %v1433, 0.0
    %v1452 = vpack.c.bf16 %v1437, %v1436
    %v1453 = vpack.c.bf16 %v1439, %v1438
    %v1454 = vpack.c.bf16 %v1441, %v1440
    %v1455 = vpack.c.bf16 %v1443, %v1442
    %v1456 = vpack.c.bf16 %v1445, %v1444
    %v1457 = vpack.c.bf16 %v1447, %v1446
    %v1458 = vpack.c.bf16 %v1449, %v1448
    %v1459 = vpack.c.bf16 %v1451, %v1450
    %v1460 = vld [vmem:[%s7] sm:$0xf]
    %v1461 = vld [vmem:[%s7 + $0x4] sm:$0xf]
    %v1462 = vld [vmem:[%s7 + $0x8] sm:$0xf]
    %v1463 = vld [vmem:[%s7 + $0xc] sm:$0xf]
    %v1464 = vld [vmem:[%s7 + $0x10] sm:$0xf]
    %v1465 = vld [vmem:[%s7 + $0x14] sm:$0xf]
    %v1466 = vld [vmem:[%s7 + $0x18] sm:$0xf]
    %v1467 = vld [vmem:[%s7 + $0x1c] sm:$0xf]
    %v1468 = vld [vmem:[%s7 + $0x20] sm:$0xf]
    %v1469 = vld [vmem:[%s7 + $0x24] sm:$0xf]
    %v1470 = vld [vmem:[%s7 + $0x28] sm:$0xf]
    %v1471 = vld [vmem:[%s7 + $0x2c] sm:$0xf]
    %v1472 = vld [vmem:[%s7 + $0x30] sm:$0xf]
    %v1473 = vld [vmem:[%s7 + $0x34] sm:$0xf]
    %v1474 = vld [vmem:[%s7 + $0x38] sm:$0xf]
    %v1475 = vld [vmem:[%s7 + $0x3c] sm:$0xf]
    %v1476 = vld [vmem:[%s8] sm:$0x1]
    %v1478 = vlaneseq
    %v1479 = vshrl.u32 %v1478, 7
    %v1480 = vsub.s32 0, %v1479
    %v1481 = vrot.slane %v1476, %v1480
    %v1499 = vunpack.c.l.b16 %v1460
    %v1500 = vunpack.c.l.b16 %v1461
    %v1501 = vunpack.c.l.b16 %v1462
    %v1502 = vunpack.c.l.b16 %v1463
    %v1503 = vunpack.c.l.b16 %v1464
    %v1504 = vunpack.c.l.b16 %v1465
    %v1505 = vunpack.c.l.b16 %v1466
    %v1506 = vunpack.c.l.b16 %v1467
    %v1507 = vunpack.c.l.b16 %v1468
    %v1508 = vunpack.c.l.b16 %v1469
    %v1509 = vunpack.c.l.b16 %v1470
    %v1510 = vunpack.c.l.b16 %v1471
    %v1511 = vunpack.c.l.b16 %v1472
    %v1512 = vunpack.c.l.b16 %v1473
    %v1513 = vunpack.c.l.b16 %v1474
    %v1514 = vunpack.c.l.b16 %v1475
    %v1515 = vpack.c.b16 %v1500, %v1499
    %v1516 = vpack.c.b16 %v1502, %v1501
    %v1517 = vpack.c.b16 %v1504, %v1503
    %v1518 = vpack.c.b16 %v1506, %v1505
    %v1519 = vpack.c.b16 %v1508, %v1507
    %v1520 = vpack.c.b16 %v1510, %v1509
    %v1521 = vpack.c.b16 %v1512, %v1511
    %v1522 = vpack.c.b16 %v1514, %v1513
    %1531 = vmatprep.subr.bf16.mxu0 0
    %1532 = vmatpush1.bf16.msra.mxu0 %v1515
    %1533 = vmatprep.subr.bf16.mxu0 0
    %1534 = vmatpush1.bf16.msra.mxu0 %v1516
    %1535 = vmatprep.subr.bf16.mxu0 0
    %1536 = vmatpush1.bf16.msra.mxu0 %v1517
    %1537 = vmatprep.subr.bf16.mxu0 0
    %1538 = vmatpush1.bf16.msra.mxu0 %v1518
    %1539 = vmatprep.subr.bf16.mxu0 0
    %1540 = vmatpush1.bf16.msra.mxu0 %v1519
    %1541 = vmatprep.subr.bf16.mxu0 0
    %1542 = vmatpush1.bf16.msra.mxu0 %v1520
    %1543 = vmatprep.subr.bf16.mxu0 0
    %1544 = vmatpush1.bf16.msra.mxu0 %v1521
    %1545 = vmatprep.subr.bf16.mxu0 0
    %1546 = vmatpush1.bf16.msra.mxu0 %v1522
    %1547 = vmatprep.subr.bf16.mxu0 0
    %1548 = vmatpush1.bf16.msra.mxu0 0
    %1549 = vmatprep.subr.bf16.mxu0 0
    %1550 = vmatpush1.bf16.msra.mxu0 0
    %1551 = vmatprep.subr.bf16.mxu0 0
    %1552 = vmatpush1.bf16.msra.mxu0 0
    %1553 = vmatprep.subr.bf16.mxu0 0
    %1554 = vmatpush1.bf16.msra.mxu0 0
    %1555 = vmatprep.subr.bf16.mxu0 0
    %1556 = vmatpush1.bf16.msra.mxu0 0
    %1557 = vmatprep.subr.bf16.mxu0 0
    %1558 = vmatpush1.bf16.msra.mxu0 0
    %1559 = vmatprep.subr.bf16.mxu0 0
    %1560 = vmatpush1.bf16.msra.mxu0 0
    %1561 = vmatprep.subr.bf16.mxu0 0
    %1562 = vmatpush1.bf16.msra.mxu0 0
    %1563 = vmatprep.mubr.bf16.mxu0 0
    %1564 = vmatmul.mubr.bf16.gmra.mrb[0].mxu0 %v1452
    %v1565 = vpop.f32.mrb[0].mxu0
    %v1566 = vadd.f32 %v1481, %v1565
    %v1567 = vpop.f32.mrb[0].mxu0
    %v1568 = vpop.f32.mrb[0].mxu0
    %v1569 = vadd.f32 %v1481, %v1568
    %v1570 = vpop.f32.mrb[0].mxu0
    %1571 = vmatprep.mubr.bf16.mxu0 0
    %1572 = vmatmul.mubr.bf16.gmra.mrb[0].mxu0 %v1453
    %v1573 = vpop.f32.mrb[0].mxu0
    %v1574 = vadd.f32 %v1481, %v1573
    %v1575 = vpop.f32.mrb[0].mxu0
    %v1576 = vpop.f32.mrb[0].mxu0
    %v1577 = vadd.f32 %v1481, %v1576
    %v1578 = vpop.f32.mrb[0].mxu0
    %1579 = vmatprep.mubr.bf16.mxu0 0
    %1580 = vmatmul.mubr.bf16.gmra.mrb[0].mxu0 %v1454
    %v1581 = vpop.f32.mrb[0].mxu0
    %v1582 = vadd.f32 %v1481, %v1581
    %v1583 = vpop.f32.mrb[0].mxu0
    %v1584 = vpop.f32.mrb[0].mxu0
    %v1585 = vadd.f32 %v1481, %v1584
    %v1586 = vpop.f32.mrb[0].mxu0
    %1587 = vmatprep.mubr.bf16.mxu0 0
    %1588 = vmatmul.mubr.bf16.gmra.mrb[0].mxu0 %v1455
    %v1589 = vpop.f32.mrb[0].mxu0
    %v1590 = vadd.f32 %v1481, %v1589
    %v1591 = vpop.f32.mrb[0].mxu0
    %v1592 = vpop.f32.mrb[0].mxu0
    %v1593 = vadd.f32 %v1481, %v1592
    %v1594 = vpop.f32.mrb[0].mxu0
    %1595 = vmatprep.mubr.bf16.mxu0 0
    %1596 = vmatmul.mubr.bf16.gmra.mrb[0].mxu0 %v1456
    %v1597 = vpop.f32.mrb[0].mxu0
    %v1598 = vadd.f32 %v1481, %v1597
    %v1599 = vpop.f32.mrb[0].mxu0
    %v1600 = vpop.f32.mrb[0].mxu0
    %v1601 = vadd.f32 %v1481, %v1600
    %v1602 = vpop.f32.mrb[0].mxu0
    %1603 = vmatprep.mubr.bf16.mxu0 0
    %1604 = vmatmul.mubr.bf16.gmra.mrb[0].mxu0 %v1457
    %v1605 = vpop.f32.mrb[0].mxu0
    %v1606 = vadd.f32 %v1481, %v1605
    %v1607 = vpop.f32.mrb[0].mxu0
    %v1608 = vpop.f32.mrb[0].mxu0
    %v1609 = vadd.f32 %v1481, %v1608
    %v1610 = vpop.f32.mrb[0].mxu0
    %1611 = vmatprep.mubr.bf16.mxu0 0
    %1612 = vmatmul.mubr.bf16.gmra.mrb[0].mxu0 %v1458
    %v1613 = vpop.f32.mrb[0].mxu0
    %v1614 = vadd.f32 %v1481, %v1613
    %v1615 = vpop.f32.mrb[0].mxu0
    %v1616 = vpop.f32.mrb[0].mxu0
    %v1617 = vadd.f32 %v1481, %v1616
    %v1618 = vpop.f32.mrb[0].mxu0
    %1619 = vmatprep.mubr.bf16.mxu0 0
    %1620 = vmatmul.mubr.bf16.gmra.mrb[0].mxu0 %v1459
    %v1621 = vpop.f32.mrb[0].mxu0
    %v1622 = vadd.f32 %v1481, %v1621
    %v1623 = vpop.f32.mrb[0].mxu0
    %v1624 = vpop.f32.mrb[0].mxu0
    %v1625 = vadd.f32 %v1481, %v1624
    %v1626 = vpop.f32.mrb[0].mxu0
    %1627 = vdwg.mxu0
    %1628 = vst [vmem:[#allocation10] sm:$0xff] %v1566
    %1629 = vst [vmem:[#allocation10 + $0x8] sm:$0xff] %v1569
    %1630 = vst [vmem:[#allocation10 + $0x10] sm:$0xff] %v1574
    %1631 = vst [vmem:[#allocation10 + $0x18] sm:$0xff] %v1577
    %1632 = vst [vmem:[#allocation10 + $0x20] sm:$0xff] %v1582
    %1633 = vst [vmem:[#allocation10 + $0x28] sm:$0xff] %v1585
    %1634 = vst [vmem:[#allocation10 + $0x30] sm:$0xff] %v1590
    %1635 = vst [vmem:[#allocation10 + $0x38] sm:$0xff] %v1593
    %1636 = vst [vmem:[#allocation10 + $0x40] sm:$0xff] %v1598
    %1637 = vst [vmem:[#allocation10 + $0x48] sm:$0xff] %v1601
    %1638 = vst [vmem:[#allocation10 + $0x50] sm:$0xff] %v1606
    %1639 = vst [vmem:[#allocation10 + $0x58] sm:$0xff] %v1609
    %1640 = vst [vmem:[#allocation10 + $0x60] sm:$0xff] %v1614
    %1641 = vst [vmem:[#allocation10 + $0x68] sm:$0xff] %v1617
    %1642 = vst [vmem:[#allocation10 + $0x70] sm:$0xff] %v1622
    %1643 = vst [vmem:[#allocation10 + $0x78] sm:$0xff] %v1625
    // Predicated region
    $region54: #{tpu_custom_call.1} parent=1 // pred_check
      _
    $region55: #{tpu_custom_call.1} parent=1 // pred_check_branch
      %1645 = sbr.rel (0) target = $region57
    $region56: #{tpu_custom_call.1} parent=1 // pred_region
      %s1647 = ssub.s32 2048, 2048
      %1648 = vsyncadd [#allocation4], %s1647
      %s1649 = sshll.u32 [#allocation10], 4
      %s1650 = int_to_ptr.vmem [resolvable:$true] %s1649
      %1655 = dma.vmem_to_hbm [thread:$0]  %s1650, 2048, %s9, [#allocation4], 128, 128, 8
    $region57: #{tpu_custom_call.1} parent=1 // pred_fallthru
      _
    // Predicated region
    $region58: #{tpu_custom_call.1} parent=1 // pred_check
      _
    $region59: #{tpu_custom_call.1} parent=1 // pred_check_branch
      %1657 = sbr.rel (0) target = $region61
    $region60: #{tpu_custom_call.1} parent=1 // pred_region
      %1658 = dma.done [#allocation4], 2048
    $region61: #{tpu_custom_call.1} parent=1 // pred_fallthru
      _
    %1659 = vsyncpa [#allocation3], 1
    %1660 = vsyncpa [#allocation6], 1
    %1661 = vsyncpa [#allocation9], 1
    %1662 = vsyncpa [#allocation4], 1

</llo_original>
